<compile_context>
chip_gen: v6e
topology: v6e:2x2x1
jax: 0.10.0
libtpu: 0.0.40
codegen_flags: <defaults>
</compile_context>

<pallas_src>
import functools

import jax
import jax.numpy as jnp
from jax import lax
from jax.experimental import pallas as pl
from jax.experimental.pallas import tpu as pltpu


def _round_up(n: int, m: int) -> int:
    return ((n + m - 1) // m) * m


def _ff_kernel(x_ref, gamma_ref, beta_ref, w1_ref, b1_ref, w2_ref, b2_ref,
               o_ref, *, eps):
    """One row-tile of: LayerNorm -> Linear -> GELU -> Linear."""
    # ---- LayerNorm in f32 (elementwise stays f32: portable to v5e). ----
    x = x_ref[...].astype(jnp.float32)
    mean = jnp.mean(x, axis=-1, keepdims=True)
    centered = x - mean
    var = jnp.mean(centered * centered, axis=-1, keepdims=True)
    xn = centered * lax.rsqrt(var + eps)
    xn = xn * gamma_ref[...] + beta_ref[...]          # params pre-cast to f32

    # ---- Linear 1 on the MXU: bf16 operands, f32 accumulation. ----
    h = jnp.dot(xn.astype(w1_ref.dtype), w1_ref[...],
                preferred_element_type=jnp.float32) + b1_ref[...]

    # Exact (erf) GELU, matching torch.nn.GELU() default.
    h = 0.5 * h * (1.0 + lax.erf(h * 0.7071067811865476))

    # Dropout(p=0.0) is the identity in train/eval -> no-op.
    # TODO(synk): non-zero dropout would need pltpu.prng_seed/prng_random_bits.

    # ---- Linear 2 on the MXU. ----
    out = jnp.dot(h.astype(w2_ref.dtype), w2_ref[...],
                  preferred_element_type=jnp.float32) + b2_ref[...]

    o_ref[...] = out.astype(o_ref.dtype)


def _make_in_specs(tile, D, H, single_buffer_weights):
    """x is row-tiled; LN params / weights / biases are grid-resident."""
    def resident(shape):
        idx = lambda *_: (0,) * len(shape)
        if single_buffer_weights:
            # Constant index map -> fetched once; one buffer saves VMEM (v7x).
            return pl.BlockSpec(shape, idx,
                                pipeline_mode=pl.Buffered(buffer_count=1))
        return pl.BlockSpec(shape, idx)

    return [
        pl.BlockSpec((tile, D), lambda i: (i, 0)),  # x row tile (pipelined)
        resident((1, D)),                           # gamma
        resident((1, D)),                           # beta
        resident((D, H)),                           # W1
        resident((1, H)),                           # b1
        resident((H, D)),                           # W2
        resident((1, D)),                           # b2
    ]


def _vmem_limit_bytes(tile, D, H, x_itemsize, w_itemsize):
    est = 0
    est += 2 * tile * D * x_itemsize          # input tile, double-buffered
    est += 2 * tile * D * x_itemsize          # output tile, double-buffered
    est += 2 * 2 * D * H * w_itemsize         # W1 + W2 (allow 2 buffers each)
    est += 2 * (3 * D + H) * 4                # gamma/beta/b1/b2 (f32)
    est += tile * H * 4 + tile * D * 4        # f32 intermediates
    est += 8 * 1024 * 1024                    # scratch headroom
    return int(min(max(est, 32 * 1024 * 1024), 96 * 1024 * 1024))


def _call_ff(x2d, gamma2, beta2, w1c, b1_2, w2c, b2_2, *, tile, eps,
             single_buffer_weights):
    Mp, D = x2d.shape
    H = w1c.shape[1]
    grid = (Mp // tile,)
    vmem_limit = _vmem_limit_bytes(tile, D, H, x2d.dtype.itemsize,
                                   w1c.dtype.itemsize)
    return pl.pallas_call(
        functools.partial(_ff_kernel, eps=eps),
        out_shape=jax.ShapeDtypeStruct((Mp, D), x2d.dtype),
        grid_spec=pltpu.PrefetchScalarGridSpec(
            num_scalar_prefetch=0,
            grid=grid,
            in_specs=_make_in_specs(tile, D, H, single_buffer_weights),
            out_specs=pl.BlockSpec((tile, D), lambda i: (i, 0)),
        ),
        compiler_params=pltpu.CompilerParams(
            dimension_semantics=("parallel",),   # rows shard across TCs (v7x)
            vmem_limit_bytes=vmem_limit),
    )(x2d, gamma2, beta2, w1c, b1_2, w2c, b2_2)


def feed_forward(x, params, *, row_tile=256, eps=1e-5,
                 matmul_dtype=jnp.bfloat16):
    """x: (batch, seq, dim) -> (batch, seq, dim).

    For best performance `dim` and `hidden` should be multiples of 128
    (lane-dense stores / full MXU width); rows (batch*seq) are padded to the
    row tile automatically.
    """
    gamma, beta, w1, b1, w2, b2 = params
    B, S, D = x.shape
    H = w1.shape[1]
    M = B * S

    # Big row tile fills the MXU and amortizes per-grid-step overhead; clamp
    # for small inputs and split so the grid has >= 2 parallel steps.
    row_tile = max(8, _round_up(row_tile, 8))
    tile = min(row_tile, _round_up(M, 8))
    if M > 8 and _round_up(M, tile) // tile < 2:
        tile = max(8, _round_up((M + 1) // 2, 8))
    Mp = _round_up(M, tile)

    x2d = x.reshape(M, D)
    if Mp != M:
        x2d = jnp.pad(x2d, ((0, Mp - M), (0, 0)))

    # LN params / biases in f32 once; weights in the low-precision MXU dtype.
    gamma2 = gamma.astype(jnp.float32).reshape(1, D)
    beta2 = beta.astype(jnp.float32).reshape(1, D)
    b1_2 = b1.astype(jnp.float32).reshape(1, H)
    b2_2 = b2.astype(jnp.float32).reshape(1, D)
    w1c = w1.astype(matmul_dtype)
    w2c = w2.astype(matmul_dtype)

    args = (x2d, gamma2, beta2, w1c, b1_2, w2c, b2_2)
    try:
        out2d = _call_ff(*args, tile=tile, eps=eps, single_buffer_weights=True)
    except Exception:
        # pipeline_mode=pl.Buffered(1) unsupported on this JAX/Mosaic build:
        # fall back to default (double-buffered) resident weights.
        out2d = _call_ff(*args, tile=tile, eps=eps,
                         single_buffer_weights=False)

    if Mp != M:
        out2d = out2d[:M]
    return out2d.reshape(B, S, D)


def _reference(x, params, eps=1e-5):
    """Plain-JAX f32 reference of the PyTorch module's forward pass."""
    gamma, beta, w1, b1, w2, b2 = params
    xf = x.astype(jnp.float32)
    mean = jnp.mean(xf, axis=-1, keepdims=True)
    var = jnp.mean((xf - mean) ** 2, axis=-1, keepdims=True)
    xn = (xf - mean) / jnp.sqrt(var + eps) * gamma + beta
    h = xn @ w1 + b1
    h = 0.5 * h * (1.0 + lax.erf(h / jnp.sqrt(2.0)))
    out = h @ w2 + b2
    return out.astype(x.dtype)


if __name__ == "__main__":
    # Small but lane-dense shapes: dim / hidden are multiples of 128.
    B, S, D, H = 2, 128, 128, 256

    key = jax.random.PRNGKey(0)
    kx, kg, kb, kw1, kb1, kw2, kb2 = jax.random.split(key, 7)

    x = jax.random.normal(kx, (B, S, D), dtype=jnp.float32)

    gamma = 1.0 + 0.1 * jax.random.normal(kg, (D,), dtype=jnp.float32)
    beta = 0.1 * jax.random.normal(kb, (D,), dtype=jnp.float32)
    # nn.Linear stores weight as (out, in); we use (in, out) for x @ W.
    w1 = jax.random.normal(kw1, (D, H), dtype=jnp.float32) * (1.0 / jnp.sqrt(D))
    b1 = 0.01 * jax.random.normal(kb1, (H,), dtype=jnp.float32)
    w2 = jax.random.normal(kw2, (H, D), dtype=jnp.float32) * (1.0 / jnp.sqrt(H))
    b2 = 0.01 * jax.random.normal(kb2, (D,), dtype=jnp.float32)
    params = (gamma, beta, w1, b1, w2, b2)

    # bf16 matmul operands (f32 accumulation) -> compare against the f32
    # reference with a correspondingly loosened tolerance.
    out = jax.block_until_ready(feed_forward(x, params))
    ref = _reference(x, params)
    assert out.shape == (B, S, D)
    assert jnp.allclose(out, ref, atol=5e-2, rtol=5e-2), "mismatch vs reference"

    # Rows that do not divide the tile exercise the padding path.
    x_odd = x[:, :100]                        # batch*seq = 200
    out_odd = jax.block_until_ready(feed_forward(x_odd, params))
    ref_odd = _reference(x_odd, params)
    assert out_odd.shape == x_odd.shape
    assert jnp.allclose(out_odd, ref_odd, atol=5e-2, rtol=5e-2), \
        "mismatch vs reference (padded rows)"

    print("KERNEL_OK")
</pallas_src>

<mosaic_0001>
module attributes {stable_mosaic.version = 11 : i64} {
  func.func @_ff_kernel(%arg0: i32, %arg1: memref<128x128xf32, #tpu.memory_space<vmem>>, %arg2: memref<1x128xf32, #tpu.memory_space<vmem>>, %arg3: memref<1x128xf32, #tpu.memory_space<vmem>>, %arg4: memref<128x256xbf16, #tpu.memory_space<vmem>>, %arg5: memref<1x256xf32, #tpu.memory_space<vmem>>, %arg6: memref<256x128xbf16, #tpu.memory_space<vmem>>, %arg7: memref<1x128xf32, #tpu.memory_space<vmem>>, %arg8: memref<128x128xf32, #tpu.memory_space<vmem>>) attributes {dimension_semantics = [#tpu.dimension_semantics<parallel>], iteration_bounds = array<i64: 2>, scalar_prefetch = 0 : i64, scratch_operands = 0 : i64, tpu.core_type = #tpu.core_type<tc>, window_params = [{transform_indices = @transform_0, window_bounds = array<i64: 128, 128>}, {pipeline_mode = #tpu.pipeline_mode<synchronous>, transform_indices = @transform_1, window_bounds = array<i64: 1, 128>}, {pipeline_mode = #tpu.pipeline_mode<synchronous>, transform_indices = @transform_2, window_bounds = array<i64: 1, 128>}, {pipeline_mode = #tpu.pipeline_mode<synchronous>, transform_indices = @transform_3, window_bounds = array<i64: 128, 256>}, {pipeline_mode = #tpu.pipeline_mode<synchronous>, transform_indices = @transform_4, window_bounds = array<i64: 1, 256>}, {pipeline_mode = #tpu.pipeline_mode<synchronous>, transform_indices = @transform_5, window_bounds = array<i64: 256, 128>}, {pipeline_mode = #tpu.pipeline_mode<synchronous>, transform_indices = @transform_6, window_bounds = array<i64: 1, 128>}, {transform_indices = @transform_7, window_bounds = array<i64: 128, 128>}]} {
    %c0 = arith.constant 0 : index
    %c0_0 = arith.constant 0 : index
    %0 = vector.load %arg1[%c0, %c0_0] : memref<128x128xf32, #tpu.memory_space<vmem>>, vector<128x128xf32>
    %cst = arith.constant dense<0.000000e+00> : vector<128xf32>
    %1 = vector.multi_reduction <add>, %0, %cst [1] : vector<128x128xf32> to vector<128xf32>
    %2 = vector.shape_cast %1 : vector<128xf32> to vector<128x1xf32>
    %cst_1 = arith.constant 1.280000e+02 : f32
    %3 = vector.broadcast %cst_1 : f32 to vector<128x1xf32>
    %4 = arith.divf %2, %3 : vector<128x1xf32>
    %5 = vector.broadcast %4 : vector<128x1xf32> to vector<128x128xf32>
    %6 = arith.subf %0, %5 : vector<128x128xf32>
    %7 = arith.mulf %6, %6 : vector<128x128xf32>
    %cst_2 = arith.constant dense<0.000000e+00> : vector<128xf32>
    %8 = vector.multi_reduction <add>, %7, %cst_2 [1] : vector<128x128xf32> to vector<128xf32>
    %9 = vector.shape_cast %8 : vector<128xf32> to vector<128x1xf32>
    %cst_3 = arith.constant 1.280000e+02 : f32
    %10 = vector.broadcast %cst_3 : f32 to vector<128x1xf32>
    %11 = arith.divf %9, %10 : vector<128x1xf32>
    %cst_4 = arith.constant 9.99999974E-6 : f32
    %12 = vector.broadcast %cst_4 : f32 to vector<128x1xf32>
    %13 = arith.addf %11, %12 : vector<128x1xf32>
    %14 = math.rsqrt %13 : vector<128x1xf32>
    %15 = vector.broadcast %14 : vector<128x1xf32> to vector<128x128xf32>
    %16 = arith.mulf %6, %15 : vector<128x128xf32>
    %c0_5 = arith.constant 0 : index
    %c0_6 = arith.constant 0 : index
    %17 = vector.load %arg2[%c0_5, %c0_6] : memref<1x128xf32, #tpu.memory_space<vmem>>, vector<1x128xf32>
    %18 = vector.broadcast %17 : vector<1x128xf32> to vector<128x128xf32>
    %19 = arith.mulf %16, %18 : vector<128x128xf32>
    %c0_7 = arith.constant 0 : index
    %c0_8 = arith.constant 0 : index
    %20 = vector.load %arg3[%c0_7, %c0_8] : memref<1x128xf32, #tpu.memory_space<vmem>>, vector<1x128xf32>
    %21 = vector.broadcast %20 : vector<1x128xf32> to vector<128x128xf32>
    %22 = arith.addf %19, %21 : vector<128x128xf32>
    %23 = arith.truncf %22 : vector<128x128xf32> to vector<128x128xbf16>
    %c0_9 = arith.constant 0 : index
    %c0_10 = arith.constant 0 : index
    %24 = vector.load %arg4[%c0_9, %c0_10] : memref<128x256xbf16, #tpu.memory_space<vmem>>, vector<128x256xbf16>
    %cst_11 = arith.constant dense<0.000000e+00> : vector<128x256xf32>
    %25 = tpu.matmul %23, %24, %cst_11 {dimension_numbers = #tpu.dot_dimension_numbers<[1], [0], [0], [1], [0, 0, 1, 1], [], []>} : vector<128x128xbf16>, vector<128x256xbf16>, vector<128x256xf32> -> vector<128x256xf32>
    %c0_12 = arith.constant 0 : index
    %c0_13 = arith.constant 0 : index
    %26 = vector.load %arg5[%c0_12, %c0_13] : memref<1x256xf32, #tpu.memory_space<vmem>>, vector<1x256xf32>
    %27 = vector.broadcast %26 : vector<1x256xf32> to vector<128x256xf32>
    %28 = arith.addf %25, %27 : vector<128x256xf32>
    %cst_14 = arith.constant 5.000000e-01 : f32
    %29 = vector.broadcast %cst_14 : f32 to vector<128x256xf32>
    %30 = arith.mulf %29, %28 : vector<128x256xf32>
    %cst_15 = arith.constant 0.707106769 : f32
    %31 = vector.broadcast %cst_15 : f32 to vector<128x256xf32>
    %32 = arith.mulf %28, %31 : vector<128x256xf32>
    %33 = math.erf %32 : vector<128x256xf32>
    %cst_16 = arith.constant 1.000000e+00 : f32
    %34 = vector.broadcast %cst_16 : f32 to vector<128x256xf32>
    %35 = arith.addf %34, %33 : vector<128x256xf32>
    %36 = arith.mulf %30, %35 : vector<128x256xf32>
    %37 = arith.truncf %36 : vector<128x256xf32> to vector<128x256xbf16>
    %c0_17 = arith.constant 0 : index
    %c0_18 = arith.constant 0 : index
    %38 = vector.load %arg6[%c0_17, %c0_18] : memref<256x128xbf16, #tpu.memory_space<vmem>>, vector<256x128xbf16>
    %cst_19 = arith.constant dense<0.000000e+00> : vector<128x128xf32>
    %39 = tpu.matmul %37, %38, %cst_19 {dimension_numbers = #tpu.dot_dimension_numbers<[1], [0], [0], [1], [0, 0, 1, 1], [], []>} : vector<128x256xbf16>, vector<256x128xbf16>, vector<128x128xf32> -> vector<128x128xf32>
    %c0_20 = arith.constant 0 : index
    %c0_21 = arith.constant 0 : index
    %40 = vector.load %arg7[%c0_20, %c0_21] : memref<1x128xf32, #tpu.memory_space<vmem>>, vector<1x128xf32>
    %41 = vector.broadcast %40 : vector<1x128xf32> to vector<128x128xf32>
    %42 = arith.addf %39, %41 : vector<128x128xf32>
    %c0_22 = arith.constant 0 : index
    %c0_23 = arith.constant 0 : index
    %43 = vector.load %arg8[%c0_22, %c0_23] : memref<128x128xf32, #tpu.memory_space<vmem>>, vector<128x128xf32>
    tpu.vector_store %arg8[%c0_22, %c0_23], %42 {strides = array<i32>} : memref<128x128xf32, #tpu.memory_space<vmem>>, vector<128x128xf32>,
    return
  }
  func.func @transform_0(%arg0: i32) -> (i32, i32) {
    %c0_i32 = arith.constant 0 : i32
    %c0_i32_0 = arith.constant 0 : i32
    return %arg0, %c0_i32 : i32, i32
  }
  func.func @transform_1(%arg0: i32) -> (i32, i32) {
    %c0_i32 = arith.constant 0 : i32
    %c0_i32_0 = arith.constant 0 : i32
    %c0_i32_1 = arith.constant 0 : i32
    return %c0_i32, %c0_i32_0 : i32, i32
  }
  func.func @transform_2(%arg0: i32) -> (i32, i32) {
    %c0_i32 = arith.constant 0 : i32
    %c0_i32_0 = arith.constant 0 : i32
    %c0_i32_1 = arith.constant 0 : i32
    return %c0_i32, %c0_i32_0 : i32, i32
  }
  func.func @transform_3(%arg0: i32) -> (i32, i32) {
    %c0_i32 = arith.constant 0 : i32
    %c0_i32_0 = arith.constant 0 : i32
    %c0_i32_1 = arith.constant 0 : i32
    return %c0_i32, %c0_i32_0 : i32, i32
  }
  func.func @transform_4(%arg0: i32) -> (i32, i32) {
    %c0_i32 = arith.constant 0 : i32
    %c0_i32_0 = arith.constant 0 : i32
    %c0_i32_1 = arith.constant 0 : i32
    return %c0_i32, %c0_i32_0 : i32, i32
  }
  func.func @transform_5(%arg0: i32) -> (i32, i32) {
    %c0_i32 = arith.constant 0 : i32
    %c0_i32_0 = arith.constant 0 : i32
    %c0_i32_1 = arith.constant 0 : i32
    return %c0_i32, %c0_i32_0 : i32, i32
  }
  func.func @transform_6(%arg0: i32) -> (i32, i32) {
    %c0_i32 = arith.constant 0 : i32
    %c0_i32_0 = arith.constant 0 : i32
    %c0_i32_1 = arith.constant 0 : i32
    return %c0_i32, %c0_i32_0 : i32, i32
  }
  func.func @transform_7(%arg0: i32) -> (i32, i32) {
    %c0_i32 = arith.constant 0 : i32
    %c0_i32_0 = arith.constant 0 : i32
    return %arg0, %c0_i32 : i32, i32
  }
}

module attributes {stable_mosaic.version = 11 : i64} {
  func.func @_ff_kernel(%arg0: i32, %arg1: memref<128x128xf32, #tpu.memory_space<vmem>>, %arg2: memref<1x128xf32, #tpu.memory_space<vmem>>, %arg3: memref<1x128xf32, #tpu.memory_space<vmem>>, %arg4: memref<128x256xbf16, #tpu.memory_space<vmem>>, %arg5: memref<1x256xf32, #tpu.memory_space<vmem>>, %arg6: memref<256x128xbf16, #tpu.memory_space<vmem>>, %arg7: memref<1x128xf32, #tpu.memory_space<vmem>>, %arg8: memref<128x128xf32, #tpu.memory_space<vmem>>) attributes {dimension_semantics = [#tpu.dimension_semantics<parallel>], iteration_bounds = array<i64: 2>, scalar_prefetch = 0 : i64, scratch_operands = 0 : i64, tpu.core_type = #tpu.core_type<tc>, window_params = [{transform_indices = @transform_0, window_bounds = array<i64: 128, 128>}, {pipeline_mode = #tpu.pipeline_mode<synchronous>, transform_indices = @transform_1, window_bounds = array<i64: 1, 128>}, {pipeline_mode = #tpu.pipeline_mode<synchronous>, transform_indices = @transform_2, window_bounds = array<i64: 1, 128>}, {pipeline_mode = #tpu.pipeline_mode<synchronous>, transform_indices = @transform_3, window_bounds = array<i64: 128, 256>}, {pipeline_mode = #tpu.pipeline_mode<synchronous>, transform_indices = @transform_4, window_bounds = array<i64: 1, 256>}, {pipeline_mode = #tpu.pipeline_mode<synchronous>, transform_indices = @transform_5, window_bounds = array<i64: 256, 128>}, {pipeline_mode = #tpu.pipeline_mode<synchronous>, transform_indices = @transform_6, window_bounds = array<i64: 1, 128>}, {transform_indices = @transform_7, window_bounds = array<i64: 128, 128>}]} {
    %c0 = arith.constant 0 : index
    %c0_0 = arith.constant 0 : index
    %0 = vector.load %arg1[%c0, %c0_0] : memref<128x128xf32, #tpu.memory_space<vmem>>, vector<128x128xf32>
    %cst = arith.constant dense<0.000000e+00> : vector<128xf32>
    %1 = vector.multi_reduction <add>, %0, %cst [1] : vector<128x128xf32> to vector<128xf32>
    %2 = vector.shape_cast %1 : vector<128xf32> to vector<128x1xf32>
    %cst_1 = arith.constant 1.280000e+02 : f32
    %3 = vector.broadcast %cst_1 : f32 to vector<128x1xf32>
    %4 = arith.divf %2, %3 : vector<128x1xf32>
    %5 = vector.broadcast %4 : vector<128x1xf32> to vector<128x128xf32>
    %6 = arith.subf %0, %5 : vector<128x128xf32>
    %7 = arith.mulf %6, %6 : vector<128x128xf32>
    %cst_2 = arith.constant dense<0.000000e+00> : vector<128xf32>
    %8 = vector.multi_reduction <add>, %7, %cst_2 [1] : vector<128x128xf32> to vector<128xf32>
    %9 = vector.shape_cast %8 : vector<128xf32> to vector<128x1xf32>
    %cst_3 = arith.constant 1.280000e+02 : f32
    %10 = vector.broadcast %cst_3 : f32 to vector<128x1xf32>
    %11 = arith.divf %9, %10 : vector<128x1xf32>
    %cst_4 = arith.constant 9.99999974E-6 : f32
    %12 = vector.broadcast %cst_4 : f32 to vector<128x1xf32>
    %13 = arith.addf %11, %12 : vector<128x1xf32>
    %14 = math.rsqrt %13 : vector<128x1xf32>
    %15 = vector.broadcast %14 : vector<128x1xf32> to vector<128x128xf32>
    %16 = arith.mulf %6, %15 : vector<128x128xf32>
    %c0_5 = arith.constant 0 : index
    %c0_6 = arith.constant 0 : index
    %17 = vector.load %arg2[%c0_5, %c0_6] : memref<1x128xf32, #tpu.memory_space<vmem>>, vector<1x128xf32>
    %18 = vector.broadcast %17 : vector<1x128xf32> to vector<128x128xf32>
    %19 = arith.mulf %16, %18 : vector<128x128xf32>
    %c0_7 = arith.constant 0 : index
    %c0_8 = arith.constant 0 : index
    %20 = vector.load %arg3[%c0_7, %c0_8] : memref<1x128xf32, #tpu.memory_space<vmem>>, vector<1x128xf32>
    %21 = vector.broadcast %20 : vector<1x128xf32> to vector<128x128xf32>
    %22 = arith.addf %19, %21 : vector<128x128xf32>
    %23 = arith.truncf %22 : vector<128x128xf32> to vector<128x128xbf16>
    %c0_9 = arith.constant 0 : index
    %c0_10 = arith.constant 0 : index
    %24 = vector.load %arg4[%c0_9, %c0_10] : memref<128x256xbf16, #tpu.memory_space<vmem>>, vector<128x256xbf16>
    %cst_11 = arith.constant dense<0.000000e+00> : vector<128x256xf32>
    %25 = tpu.matmul %23, %24, %cst_11 {dimension_numbers = #tpu.dot_dimension_numbers<[1], [0], [0], [1], [0, 0, 1, 1], [], []>} : vector<128x128xbf16>, vector<128x256xbf16>, vector<128x256xf32> -> vector<128x256xf32>
    %c0_12 = arith.constant 0 : index
    %c0_13 = arith.constant 0 : index
    %26 = vector.load %arg5[%c0_12, %c0_13] : memref<1x256xf32, #tpu.memory_space<vmem>>, vector<1x256xf32>
    %27 = vector.broadcast %26 : vector<1x256xf32> to vector<128x256xf32>
    %28 = arith.addf %25, %27 : vector<128x256xf32>
    %cst_14 = arith.constant 5.000000e-01 : f32
    %29 = vector.broadcast %cst_14 : f32 to vector<128x256xf32>
    %30 = arith.mulf %29, %28 : vector<128x256xf32>
    %cst_15 = arith.constant 0.707106769 : f32
    %31 = vector.broadcast %cst_15 : f32 to vector<128x256xf32>
    %32 = arith.mulf %28, %31 : vector<128x256xf32>
    %33 = math.erf %32 : vector<128x256xf32>
    %cst_16 = arith.constant 1.000000e+00 : f32
    %34 = vector.broadcast %cst_16 : f32 to vector<128x256xf32>
    %35 = arith.addf %34, %33 : vector<128x256xf32>
    %36 = arith.mulf %30, %35 : vector<128x256xf32>
    %37 = arith.truncf %36 : vector<128x256xf32> to vector<128x256xbf16>
    %c0_17 = arith.constant 0 : index
    %c0_18 = arith.constant 0 : index
    %38 = vector.load %arg6[%c0_17, %c0_18] : memref<256x128xbf16, #tpu.memory_space<vmem>>, vector<256x128xbf16>
    %cst_19 = arith.constant dense<0.000000e+00> : vector<128x128xf32>
    %39 = tpu.matmul %37, %38, %cst_19 {dimension_numbers = #tpu.dot_dimension_numbers<[1], [0], [0], [1], [0, 0, 1, 1], [], []>} : vector<128x256xbf16>, vector<256x128xbf16>, vector<128x128xf32> -> vector<128x128xf32>
    %c0_20 = arith.constant 0 : index
    %c0_21 = arith.constant 0 : index
    %40 = vector.load %arg7[%c0_20, %c0_21] : memref<1x128xf32, #tpu.memory_space<vmem>>, vector<1x128xf32>
    %41 = vector.broadcast %40 : vector<1x128xf32> to vector<128x128xf32>
    %42 = arith.addf %39, %41 : vector<128x128xf32>
    %c0_22 = arith.constant 0 : index
    %c0_23 = arith.constant 0 : index
    %43 = vector.load %arg8[%c0_22, %c0_23] : memref<128x128xf32, #tpu.memory_space<vmem>>, vector<128x128xf32>
    tpu.vector_store %arg8[%c0_22, %c0_23], %42 {strides = array<i32>} : memref<128x128xf32, #tpu.memory_space<vmem>>, vector<128x128xf32>,
    return
  }
  func.func @transform_0(%arg0: i32) -> (i32, i32) {
    %c0_i32 = arith.constant 0 : i32
    %c0_i32_0 = arith.constant 0 : i32
    return %arg0, %c0_i32 : i32, i32
  }
  func.func @transform_1(%arg0: i32) -> (i32, i32) {
    %c0_i32 = arith.constant 0 : i32
    %c0_i32_0 = arith.constant 0 : i32
    %c0_i32_1 = arith.constant 0 : i32
    return %c0_i32, %c0_i32_0 : i32, i32
  }
  func.func @transform_2(%arg0: i32) -> (i32, i32) {
    %c0_i32 = arith.constant 0 : i32
    %c0_i32_0 = arith.constant 0 : i32
    %c0_i32_1 = arith.constant 0 : i32
    return %c0_i32, %c0_i32_0 : i32, i32
  }
  func.func @transform_3(%arg0: i32) -> (i32, i32) {
    %c0_i32 = arith.constant 0 : i32
    %c0_i32_0 = arith.constant 0 : i32
    %c0_i32_1 = arith.constant 0 : i32
    return %c0_i32, %c0_i32_0 : i32, i32
  }
  func.func @transform_4(%arg0: i32) -> (i32, i32) {
    %c0_i32 = arith.constant 0 : i32
    %c0_i32_0 = arith.constant 0 : i32
    %c0_i32_1 = arith.constant 0 : i32
    return %c0_i32, %c0_i32_0 : i32, i32
  }
  func.func @transform_5(%arg0: i32) -> (i32, i32) {
    %c0_i32 = arith.constant 0 : i32
    %c0_i32_0 = arith.constant 0 : i32
    %c0_i32_1 = arith.constant 0 : i32
    return %c0_i32, %c0_i32_0 : i32, i32
  }
  func.func @transform_6(%arg0: i32) -> (i32, i32) {
    %c0_i32 = arith.constant 0 : i32
    %c0_i32_0 = arith.constant 0 : i32
    %c0_i32_1 = arith.constant 0 : i32
    return %c0_i32, %c0_i32_0 : i32, i32
  }
  func.func @transform_7(%arg0: i32) -> (i32, i32) {
    %c0_i32 = arith.constant 0 : i32
    %c0_i32_0 = arith.constant 0 : i32
    return %arg0, %c0_i32 : i32, i32
  }
}

</mosaic_0001>

<llo_original>
// kernel: tpu_custom_call.1
$region0: #{tpu_custom_call.1}
  #allocation0 [shape = 'u32[]', space=smem, size = 0x4, offset = 0x4, fixed_abs, tag = 'smem constant byte address 0x4 - core index']
  #allocation1 [shape = 'u32[144,128]{1,0:T(1,128)}', space=vmem, size = 0x12000, scoped, tag = 'internal scratch']
  %s0 = inlined_call_operand.hbm [shape: f32[256,128], index: 0, kind: input, shape index: {}]
  %s1 = inlined_call_operand.vmem [shape: f32[1,128], index: 1, kind: input, shape index: {}]
  %s2 = inlined_call_operand.hbm [shape: f32[1,128], index: 2, kind: input, shape index: {}]
  %s3 = inlined_call_operand.hbm [shape: bf16[128,256], index: 3, kind: input, shape index: {}]
  %s4 = inlined_call_operand.vmem [shape: f32[1,256], index: 4, kind: input, shape index: {}]
  %s5 = inlined_call_operand.hbm [shape: bf16[256,128], index: 5, kind: input, shape index: {}]
  %s6 = inlined_call_operand.vmem [shape: f32[1,128], index: 6, kind: input, shape index: {}]
  %s7 = inlined_call_operand.hbm [shape: f32[256,128], index: 7, kind: output, shape index: {}]
  %s8 = sld [smem:[#allocation0]]
  $region77: #{tpu_custom_call.1} parent=0
    _
  %s10 = ssub.s32 1, %s8
  %s11 = scalar_select 0, %s10, %s8
  $region1: #{tpu_custom_call.1} parent=0
    #allocation2 [shape = 'u8[131072]{0}', space=vmem, size = 0x20000, scoped, tag = 'input window, operand 0']
    #allocation3 [shape = 's32[2]{0}', space=sflag, size = 0x8, scoped, tag = 'scoped memory for tpu_custom_call.1']
    #allocation4 [shape = 's32[2]{0}', space=sflag, size = 0x8, scoped, tag = 'scoped memory for tpu_custom_call.1']
    #allocation5 [shape = 'u8[512]{0}', space=vmem, size = 0x400, scoped, tag = 'input window, operand 2, single buffered']
    #allocation6 [shape = 's32[1]{0}', space=sflag, size = 0x4, scoped, tag = 'scoped memory for tpu_custom_call.1']
    #allocation7 [shape = 'u8[65536]{0}', space=vmem, size = 0x10000, scoped, tag = 'input window, operand 3, single buffered']
    #allocation8 [shape = 'u8[65536]{0}', space=vmem, size = 0x10000, scoped, tag = 'input window, operand 5, single buffered']
    #allocation9 [shape = 's32[1]{0}', space=sflag, size = 0x4, scoped, tag = 'scoped memory for tpu_custom_call.1']
    #allocation10 [shape = 'u8[131072]{0}', space=vmem, size = 0x20000, scoped, tag = 'output window, operand 0']
    %12 = vsyncpa [#allocation3], 0
    %s13 = scalar_lea.sflag [#allocation3], 1
    %14 = vsyncpa %s13, 0
    %15 = vsyncpa [#allocation6], 0
    %16 = vsyncpa [#allocation9], 0
    %17 = vsyncpa [#allocation4], 0
    %s18 = scalar_lea.sflag [#allocation4], 1
    %19 = vsyncpa %s18, 0
    loop: start=0, step=1, limit=4
    $region2: #{tpu_custom_call.1} parent=1 // loop_pre_header
      _
    $region3: #{tpu_custom_call.1} parent=1 // loop_header
      %s21 = sphi 0, %s25
      %p22 = scmp.ge.s32.totalorder %s21, 4
      %s31 = sphi 0, %s33
      %s34 = sphi 0, %s31
      %s35 = sphi 0, %s34
      %s51 = sphi 0, %s35
      %s55 = sphi 0, %s55
      %s57 = sphi 0, %s55
      %s58 = sphi 0, %s57
      %s72 = sphi 0, %s58
      %s76 = sphi 0, %s76
      %s78 = sphi 0, %s76
      %s79 = sphi 0, %s78
      %s93 = sphi 0, %s79
      %s97 = sphi 0, %s97
      %s99 = sphi 0, %s97
      %s100 = sphi 0, %s99
      %s114 = sphi 0, %s100
      %s118 = sphi 0, %s118
      %s120 = sphi 0, %s118
      %s121 = sphi 0, %s120
      %s135 = sphi 0, %s121
      %s139 = sphi 0, %s139
      %s141 = sphi 0, %s139
      %s142 = sphi 0, %s141
      %s156 = sphi 0, %s142
      %s160 = sphi 0, %s160
      %s162 = sphi 0, %s160
      %s163 = sphi 0, %s162
      %s177 = sphi 0, %s163
      %s183 = sphi 0, %s185
      %s186 = sphi 0, %s183
      %s187 = sphi 0, %s186
      %s203 = sphi 0, %s187
    $region4: #{tpu_custom_call.1} parent=1 // loop_header_branch
      %24 = sbr.rel (%p22) target = $region8
    $region5: #{tpu_custom_call.1} parent=1 // loop_body
      %s26 = ssub.s32 %s21, 1
      %s27 = ssub.s32 %s21, 2
      %s28 = sadd.s32 %s21, 1
      %s29 = ssub.s32 %s21, %s28
      %p30 = scmp.eq.s32.totalorder %s29, 0
      %s32 = sadd.s32 %s31, 1
      %s33 = scalar_select %p30, %s31, %s32
      %p36 = pneg %p30
      %p37 = scmp.eq.s32.totalorder %s21, 1
      %p38 = por %p36, %p37
      %p39 = scmp.ne.s32.totalorder %s31, %s34
      %p40 = scmp.eq.s32.totalorder %s21, 0
      %p41 = por %p39, %p40
      %p42 = scmp.ne.s32.totalorder %s31, %s34
      %p43 = scmp.eq.s32.totalorder %s26, 1
      %p44 = por %p42, %p43
      %p45 = scmp.ne.s32.totalorder %s34, %s35
      %p46 = scmp.eq.s32.totalorder %s26, 0
      %p47 = por %p45, %p46
      %p48 = scmp.ne.s32.totalorder %s34, %s35
      %p49 = scmp.eq.s32.totalorder %s27, 1
      %p50 = por %p48, %p49
      %p52 = scmp.ne.s32.totalorder %s35, %s51
      %p53 = scmp.eq.s32.totalorder %s27, 0
      %p54 = por %p52, %p53
      %s56 = sadd.s32 %s55, 1
      %p59 = scmp.eq.s32.totalorder %s21, 1
      %p60 = scmp.ne.s32.totalorder %s55, %s57
      %p61 = scmp.eq.s32.totalorder %s21, 0
      %p62 = por %p60, %p61
      %p63 = scmp.ne.s32.totalorder %s55, %s57
      %p64 = scmp.eq.s32.totalorder %s26, 1
      %p65 = por %p63, %p64
      %p66 = scmp.ne.s32.totalorder %s57, %s58
      %p67 = scmp.eq.s32.totalorder %s26, 0
      %p68 = por %p66, %p67
      %p69 = scmp.ne.s32.totalorder %s57, %s58
      %p70 = scmp.eq.s32.totalorder %s27, 1
      %p71 = por %p69, %p70
      %p73 = scmp.ne.s32.totalorder %s58, %s72
      %p74 = scmp.eq.s32.totalorder %s27, 0
      %p75 = por %p73, %p74
      %s77 = sadd.s32 %s76, 1
      %p80 = scmp.eq.s32.totalorder %s21, 1
      %p81 = scmp.ne.s32.totalorder %s76, %s78
      %p82 = scmp.eq.s32.totalorder %s21, 0
      %p83 = por %p81, %p82
      %p84 = scmp.ne.s32.totalorder %s76, %s78
      %p85 = scmp.eq.s32.totalorder %s26, 1
      %p86 = por %p84, %p85
      %p87 = scmp.ne.s32.totalorder %s78, %s79
      %p88 = scmp.eq.s32.totalorder %s26, 0
      %p89 = por %p87, %p88
      %p90 = scmp.ne.s32.totalorder %s78, %s79
      %p91 = scmp.eq.s32.totalorder %s27, 1
      %p92 = por %p90, %p91
      %p94 = scmp.ne.s32.totalorder %s79, %s93
      %p95 = scmp.eq.s32.totalorder %s27, 0
      %p96 = por %p94, %p95
      %s98 = sadd.s32 %s97, 1
      %p101 = scmp.eq.s32.totalorder %s21, 1
      %p102 = scmp.ne.s32.totalorder %s97, %s99
      %p103 = scmp.eq.s32.totalorder %s21, 0
      %p104 = por %p102, %p103
      %p105 = scmp.ne.s32.totalorder %s97, %s99
      %p106 = scmp.eq.s32.totalorder %s26, 1
      %p107 = por %p105, %p106
      %p108 = scmp.ne.s32.totalorder %s99, %s100
      %p109 = scmp.eq.s32.totalorder %s26, 0
      %p110 = por %p108, %p109
      %p111 = scmp.ne.s32.totalorder %s99, %s100
      %p112 = scmp.eq.s32.totalorder %s27, 1
      %p113 = por %p111, %p112
      %p115 = scmp.ne.s32.totalorder %s100, %s114
      %p116 = scmp.eq.s32.totalorder %s27, 0
      %p117 = por %p115, %p116
      %s119 = sadd.s32 %s118, 1
      %p122 = scmp.eq.s32.totalorder %s21, 1
      %p123 = scmp.ne.s32.totalorder %s118, %s120
      %p124 = scmp.eq.s32.totalorder %s21, 0
      %p125 = por %p123, %p124
      %p126 = scmp.ne.s32.totalorder %s118, %s120
      %p127 = scmp.eq.s32.totalorder %s26, 1
      %p128 = por %p126, %p127
      %p129 = scmp.ne.s32.totalorder %s120, %s121
      %p130 = scmp.eq.s32.totalorder %s26, 0
      %p131 = por %p129, %p130
      %p132 = scmp.ne.s32.totalorder %s120, %s121
      %p133 = scmp.eq.s32.totalorder %s27, 1
      %p134 = por %p132, %p133
      %p136 = scmp.ne.s32.totalorder %s121, %s135
      %p137 = scmp.eq.s32.totalorder %s27, 0
      %p138 = por %p136, %p137
      %s140 = sadd.s32 %s139, 1
      %p143 = scmp.eq.s32.totalorder %s21, 1
      %p144 = scmp.ne.s32.totalorder %s139, %s141
      %p145 = scmp.eq.s32.totalorder %s21, 0
      %p146 = por %p144, %p145
      %p147 = scmp.ne.s32.totalorder %s139, %s141
      %p148 = scmp.eq.s32.totalorder %s26, 1
      %p149 = por %p147, %p148
      %p150 = scmp.ne.s32.totalorder %s141, %s142
      %p151 = scmp.eq.s32.totalorder %s26, 0
      %p152 = por %p150, %p151
      %p153 = scmp.ne.s32.totalorder %s141, %s142
      %p154 = scmp.eq.s32.totalorder %s27, 1
      %p155 = por %p153, %p154
      %p157 = scmp.ne.s32.totalorder %s142, %s156
      %p158 = scmp.eq.s32.totalorder %s27, 0
      %p159 = por %p157, %p158
      %s161 = sadd.s32 %s160, 1
      %p164 = scmp.eq.s32.totalorder %s21, 1
      %p165 = scmp.ne.s32.totalorder %s160, %s162
      %p166 = scmp.eq.s32.totalorder %s21, 0
      %p167 = por %p165, %p166
      %p168 = scmp.ne.s32.totalorder %s160, %s162
      %p169 = scmp.eq.s32.totalorder %s26, 1
      %p170 = por %p168, %p169
      %p171 = scmp.ne.s32.totalorder %s162, %s163
      %p172 = scmp.eq.s32.totalorder %s26, 0
      %p173 = por %p171, %p172
      %p174 = scmp.ne.s32.totalorder %s162, %s163
      %p175 = scmp.eq.s32.totalorder %s27, 1
      %p176 = por %p174, %p175
      %p178 = scmp.ne.s32.totalorder %s163, %s177
      %p179 = scmp.eq.s32.totalorder %s27, 0
      %p180 = por %p178, %p179
      %s181 = ssub.s32 %s21, %s28
      %p182 = scmp.eq.s32.totalorder %s181, 0
      %s184 = sadd.s32 %s183, 1
      %s185 = scalar_select %p182, %s183, %s184
      %p188 = pneg %p182
      %p189 = scmp.eq.s32.totalorder %s21, 1
      %p190 = por %p188, %p189
      %p191 = scmp.ne.s32.totalorder %s183, %s186
      %p192 = scmp.eq.s32.totalorder %s21, 0
      %p193 = por %p191, %p192
      %p194 = scmp.ne.s32.totalorder %s183, %s186
      %p195 = scmp.eq.s32.totalorder %s26, 1
      %p196 = por %p194, %p195
      %p197 = scmp.ne.s32.totalorder %s186, %s187
      %p198 = scmp.eq.s32.totalorder %s26, 0
      %p199 = por %p197, %p198
      %p200 = scmp.ne.s32.totalorder %s186, %s187
      %p201 = scmp.eq.s32.totalorder %s27, 1
      %p202 = por %p200, %p201
      %p204 = scmp.ne.s32.totalorder %s187, %s203
      %p205 = scmp.eq.s32.totalorder %s27, 0
      %p206 = por %p204, %p205
      %p207 = scmp.le.s32.totalorder 1, %s21
      %p208 = scmp.lt.s32.totalorder %s21, 3
      %p209 = pnand %p207, %p208
      %p210 = pneg %p209
      // Predicated region
      $region9: #{tpu_custom_call.1} parent=5 // pred_check
        _
      $region10: #{tpu_custom_call.1} parent=5 // pred_check_branch
        %212 = sbr.rel (%p209) target = $region12
      $region11: #{tpu_custom_call.1} parent=5 // pred_region
        %s213 = ssub.s32 %s21, 1
        // Predicated region
        $region13: #{tpu_custom_call.1} parent=11 // pred_check
          %p214 = pneg %p68
        $region14: #{tpu_custom_call.1} parent=11 // pred_check_branch
          %216 = sbr.rel (%p214) target = $region16
        $region15: #{tpu_custom_call.1} parent=11 // pred_region
          _
        $region16: #{tpu_custom_call.1} parent=11 // pred_fallthru
          _
        // Predicated region
        $region17: #{tpu_custom_call.1} parent=11 // pred_check
          %p217 = pneg %p89
        $region18: #{tpu_custom_call.1} parent=11 // pred_check_branch
          %219 = sbr.rel (%p217) target = $region20
        $region19: #{tpu_custom_call.1} parent=11 // pred_region
          %s221 = ssub.s32 16, 16
          %222 = vsyncadd [#allocation6], %s221
          %s224 = sshll.u32 [#allocation5], 4
          %s225 = int_to_ptr.vmem [resolvable:$true] %s224
          %227 = dma.hbm_to_vmem [thread:$0]  %s2, 16, %s225, [#allocation6]
        $region20: #{tpu_custom_call.1} parent=11 // pred_fallthru
          _
        // Predicated region
        $region21: #{tpu_custom_call.1} parent=11 // pred_check
          %p228 = pneg %p110
        $region22: #{tpu_custom_call.1} parent=11 // pred_check_branch
          %230 = sbr.rel (%p228) target = $region24
        $region23: #{tpu_custom_call.1} parent=11 // pred_region
          %s232 = ssub.s32 2048, 2048
          %233 = vsyncadd [#allocation6], %s232
          %s234 = sshll.u32 [#allocation7], 4
          %s235 = int_to_ptr.vmem [resolvable:$true] %s234
          %240 = dma.hbm_to_vmem [thread:$0]  %s3, 2048, %s235, [#allocation6], 128, 128, 8
        $region24: #{tpu_custom_call.1} parent=11 // pred_fallthru
          _
        // Predicated region
        $region25: #{tpu_custom_call.1} parent=11 // pred_check
          %p241 = pneg %p131
        $region26: #{tpu_custom_call.1} parent=11 // pred_check_branch
          %243 = sbr.rel (%p241) target = $region28
        $region27: #{tpu_custom_call.1} parent=11 // pred_region
          _
        $region28: #{tpu_custom_call.1} parent=11 // pred_fallthru
          _
        // Predicated region
        $region29: #{tpu_custom_call.1} parent=11 // pred_check
          %p244 = pneg %p152
        $region30: #{tpu_custom_call.1} parent=11 // pred_check_branch
          %246 = sbr.rel (%p244) target = $region32
        $region31: #{tpu_custom_call.1} parent=11 // pred_region
          %s248 = ssub.s32 2048, 2048
          %249 = vsyncadd [#allocation9], %s248
          %s250 = sshll.u32 [#allocation8], 4
          %s251 = int_to_ptr.vmem [resolvable:$true] %s250
          %256 = dma.hbm_to_vmem [thread:$0]  %s5, 2048, %s251, [#allocation9], 64, 64, 4
        $region32: #{tpu_custom_call.1} parent=11 // pred_fallthru
          _
        // Predicated region
        $region33: #{tpu_custom_call.1} parent=11 // pred_check
          %p257 = pneg %p173
        $region34: #{tpu_custom_call.1} parent=11 // pred_check_branch
          %259 = sbr.rel (%p257) target = $region36
        $region35: #{tpu_custom_call.1} parent=11 // pred_region
          _
        $region36: #{tpu_custom_call.1} parent=11 // pred_fallthru
          _
      $region12: #{tpu_custom_call.1} parent=5 // pred_fallthru
        _
      %p260 = scmp.lt.s32.totalorder %s21, 2
      // Predicated region
      $region37: #{tpu_custom_call.1} parent=5 // pred_check
        %p261 = pneg %p260
      $region38: #{tpu_custom_call.1} parent=5 // pred_check_branch
        %263 = sbr.rel (%p261) target = $region40
      $region39: #{tpu_custom_call.1} parent=5 // pred_region
        // Predicated region
        $region41: #{tpu_custom_call.1} parent=39 // pred_check
          %p264 = pneg %p41
        $region42: #{tpu_custom_call.1} parent=39 // pred_check_branch
          %266 = sbr.rel (%p264) target = $region44
        $region43: #{tpu_custom_call.1} parent=39 // pred_region
          %s267 = sand.u32 %s31, 1
          %s268 = scalar_lea.sflag [#allocation3], %s267
          %s269 = sand.u32 %s31, 1
          %s270 = smul.addr %s269, 128
          %s271 = scalar_lea.vmem [#allocation2], %s270
          %s272 = smul.u32 16, %s21
          %s274 = ssub.s32 2048, 2048
          %275 = vsyncadd %s268, %s274
          %s276 = smul.addr %s272, 128
          %s277 = scalar_lea.hbm %s0, %s276
          %s278 = sshll.u32 %s271, 4
          %s279 = int_to_ptr.vmem [resolvable:$true] %s278
          %284 = dma.hbm_to_vmem [thread:$0]  %s277, 2048, %s279, %s268, 128, 128, 8
        $region44: #{tpu_custom_call.1} parent=39 // pred_fallthru
          _
      $region40: #{tpu_custom_call.1} parent=5 // pred_fallthru
        _
      %p285 = scmp.le.s32.totalorder 1, %s21
      %p286 = scmp.lt.s32.totalorder %s21, 3
      %p287 = pnand %p285, %p286
      %p288 = pneg %p287
      // Predicated region
      $region45: #{tpu_custom_call.1} parent=5 // pred_check
        _
      $region46: #{tpu_custom_call.1} parent=5 // pred_check_branch
        %290 = sbr.rel (%p287) target = $region48
      $region47: #{tpu_custom_call.1} parent=5 // pred_region
        %s291 = ssub.s32 %s21, 1
        %s292 = sand.u32 %s34, 1
        %s293 = scalar_lea.sflag [#allocation3], %s292
        %s294 = sand.u32 %s34, 1
        %s295 = smul.addr %s294, 128
        %s296 = scalar_lea.vmem [#allocation2], %s295
        // Predicated region
        $region49: #{tpu_custom_call.1} parent=47 // pred_check
          %p297 = pneg %p47
        $region50: #{tpu_custom_call.1} parent=47 // pred_check_branch
          %299 = sbr.rel (%p297) target = $region52
        $region51: #{tpu_custom_call.1} parent=47 // pred_region
          %300 = dma.done %s293, 2048
        $region52: #{tpu_custom_call.1} parent=47 // pred_fallthru
          _
        // Predicated region
        $region53: #{tpu_custom_call.1} parent=47 // pred_check
          %p301 = pneg %p89
        $region54: #{tpu_custom_call.1} parent=47 // pred_check_branch
          %303 = sbr.rel (%p301) target = $region56
        $region55: #{tpu_custom_call.1} parent=47 // pred_region
          %304 = dma.done [#allocation6], 16
        $region56: #{tpu_custom_call.1} parent=47 // pred_fallthru
          _
        // Predicated region
        $region57: #{tpu_custom_call.1} parent=47 // pred_check
          %p305 = pneg %p110
        $region58: #{tpu_custom_call.1} parent=47 // pred_check_branch
          %307 = sbr.rel (%p305) target = $region60
        $region59: #{tpu_custom_call.1} parent=47 // pred_region
          %308 = dma.done [#allocation6], 2048
        $region60: #{tpu_custom_call.1} parent=47 // pred_fallthru
          _
        // Predicated region
        $region61: #{tpu_custom_call.1} parent=47 // pred_check
          %p309 = pneg %p152
        $region62: #{tpu_custom_call.1} parent=47 // pred_check_branch
          %311 = sbr.rel (%p309) target = $region64
        $region63: #{tpu_custom_call.1} parent=47 // pred_region
          %312 = dma.done [#allocation9], 2048
        $region64: #{tpu_custom_call.1} parent=47 // pred_fallthru
          _
        %s313 = sand.u32 %s34, 1
        %s314 = scalar_lea.sflag [#allocation3], %s313
        %s315 = sand.u32 %s34, 1
        %s316 = smul.addr %s315, 128
        %s317 = scalar_lea.vmem [#allocation2], %s316
        %p318 = pneg %p47
        %p319 = pneg %p44
        %p320 = pneg %p68
        %p321 = pneg %p65
        %p322 = pneg %p89
        %p323 = pneg %p86
        %p324 = pneg %p110
        %p325 = pneg %p107
        %p326 = pneg %p131
        %p327 = pneg %p128
        %p328 = pneg %p152
        %p329 = pneg %p149
        %p330 = pneg %p173
        %p331 = pneg %p170
        %p332 = pneg %p199
        %p333 = pneg %p196
        %s334 = sand.u32 %s186, 1
        %s335 = scalar_lea.sflag [#allocation4], %s334
        %s336 = sand.u32 %s186, 1
        %s337 = smul.addr %s336, 128
        %s338 = scalar_lea.vmem [#allocation10], %s337
        %s339 = smul.u32 16, %s26
        %s340 = smul.u32 16, %s26
        %v342 = vld [vmem:[%s296] sm:$0xff]
        %v343 = vld [vmem:[%s296 + $0x8] sm:$0xff]
        %v344 = vld [vmem:[%s296 + $0x10] sm:$0xff]
        %v345 = vld [vmem:[%s296 + $0x18] sm:$0xff]
        %v346 = vld [vmem:[%s296 + $0x20] sm:$0xff]
        %v347 = vld [vmem:[%s296 + $0x28] sm:$0xff]
        %v348 = vld [vmem:[%s296 + $0x30] sm:$0xff]
        %v349 = vld [vmem:[%s296 + $0x38] sm:$0xff]
        %v350 = vld [vmem:[%s296 + $0x40] sm:$0xff]
        %v351 = vld [vmem:[%s296 + $0x48] sm:$0xff]
        %v352 = vld [vmem:[%s296 + $0x50] sm:$0xff]
        %v353 = vld [vmem:[%s296 + $0x58] sm:$0xff]
        %v354 = vld [vmem:[%s296 + $0x60] sm:$0xff]
        %v355 = vld [vmem:[%s296 + $0x68] sm:$0xff]
        %v356 = vld [vmem:[%s296 + $0x70] sm:$0xff]
        %v357 = vld [vmem:[%s296 + $0x78] sm:$0xff]
        %358 = vadd.xlane.f32.xlu0 %v342
        %v359 = vpop.xlane.xlu0 %358
        %360 = vadd.xlane.f32.xlu0 %v343
        %v361 = vpop.xlane.xlu0 %360
        %362 = vadd.xlane.f32.xlu0 %v344
        %v363 = vpop.xlane.xlu0 %362
        %364 = vadd.xlane.f32.xlu0 %v345
        %v365 = vpop.xlane.xlu0 %364
        %366 = vadd.xlane.f32.xlu0 %v346
        %v367 = vpop.xlane.xlu0 %366
        %368 = vadd.xlane.f32.xlu0 %v347
        %v369 = vpop.xlane.xlu0 %368
        %370 = vadd.xlane.f32.xlu0 %v348
        %v371 = vpop.xlane.xlu0 %370
        %372 = vadd.xlane.f32.xlu0 %v349
        %v373 = vpop.xlane.xlu0 %372
        %374 = vadd.xlane.f32.xlu0 %v350
        %v375 = vpop.xlane.xlu0 %374
        %376 = vadd.xlane.f32.xlu0 %v351
        %v377 = vpop.xlane.xlu0 %376
        %378 = vadd.xlane.f32.xlu0 %v352
        %v379 = vpop.xlane.xlu0 %378
        %380 = vadd.xlane.f32.xlu0 %v353
        %v381 = vpop.xlane.xlu0 %380
        %382 = vadd.xlane.f32.xlu0 %v354
        %v383 = vpop.xlane.xlu0 %382
        %384 = vadd.xlane.f32.xlu0 %v355
        %v385 = vpop.xlane.xlu0 %384
        %386 = vadd.xlane.f32.xlu0 %v356
        %v387 = vpop.xlane.xlu0 %386
        %388 = vadd.xlane.f32.xlu0 %v357
        %v389 = vpop.xlane.xlu0 %388
        %v390 = vrcp.pop 128.0
        %v391 = vmul.f32 %v359, %v390
        %v392 = vmul.f32 %v361, %v390
        %v393 = vmul.f32 %v363, %v390
        %v394 = vmul.f32 %v365, %v390
        %v395 = vmul.f32 %v367, %v390
        %v396 = vmul.f32 %v369, %v390
        %v397 = vmul.f32 %v371, %v390
        %v398 = vmul.f32 %v373, %v390
        %v399 = vmul.f32 %v375, %v390
        %v400 = vmul.f32 %v377, %v390
        %v401 = vmul.f32 %v379, %v390
        %v402 = vmul.f32 %v381, %v390
        %v403 = vmul.f32 %v383, %v390
        %v404 = vmul.f32 %v385, %v390
        %v405 = vmul.f32 %v387, %v390
        %v406 = vmul.f32 %v389, %v390
        %v407 = vsub.f32 %v342, %v391
        %v408 = vsub.f32 %v343, %v392
        %v409 = vsub.f32 %v344, %v393
        %v410 = vsub.f32 %v345, %v394
        %v411 = vsub.f32 %v346, %v395
        %v412 = vsub.f32 %v347, %v396
        %v413 = vsub.f32 %v348, %v397
        %v414 = vsub.f32 %v349, %v398
        %v415 = vsub.f32 %v350, %v399
        %v416 = vsub.f32 %v351, %v400
        %v417 = vsub.f32 %v352, %v401
        %v418 = vsub.f32 %v353, %v402
        %v419 = vsub.f32 %v354, %v403
        %v420 = vsub.f32 %v355, %v404
        %v421 = vsub.f32 %v356, %v405
        %v422 = vsub.f32 %v357, %v406
        %v423 = vmul.f32 %v407, %v407
        %v424 = vmul.f32 %v408, %v408
        %v425 = vmul.f32 %v409, %v409
        %v426 = vmul.f32 %v410, %v410
        %v427 = vmul.f32 %v411, %v411
        %v428 = vmul.f32 %v412, %v412
        %v429 = vmul.f32 %v413, %v413
        %v430 = vmul.f32 %v414, %v414
        %v431 = vmul.f32 %v415, %v415
        %v432 = vmul.f32 %v416, %v416
        %v433 = vmul.f32 %v417, %v417
        %v434 = vmul.f32 %v418, %v418
        %v435 = vmul.f32 %v419, %v419
        %v436 = vmul.f32 %v420, %v420
        %v437 = vmul.f32 %v421, %v421
        %v438 = vmul.f32 %v422, %v422
        %439 = vadd.xlane.f32.xlu0 %v423
        %v440 = vpop.xlane.xlu0 %439
        %441 = vadd.xlane.f32.xlu0 %v424
        %v442 = vpop.xlane.xlu0 %441
        %443 = vadd.xlane.f32.xlu0 %v425
        %v444 = vpop.xlane.xlu0 %443
        %445 = vadd.xlane.f32.xlu0 %v426
        %v446 = vpop.xlane.xlu0 %445
        %447 = vadd.xlane.f32.xlu0 %v427
        %v448 = vpop.xlane.xlu0 %447
        %449 = vadd.xlane.f32.xlu0 %v428
        %v450 = vpop.xlane.xlu0 %449
        %451 = vadd.xlane.f32.xlu0 %v429
        %v452 = vpop.xlane.xlu0 %451
        %453 = vadd.xlane.f32.xlu0 %v430
        %v454 = vpop.xlane.xlu0 %453
        %455 = vadd.xlane.f32.xlu0 %v431
        %v456 = vpop.xlane.xlu0 %455
        %457 = vadd.xlane.f32.xlu0 %v432
        %v458 = vpop.xlane.xlu0 %457
        %459 = vadd.xlane.f32.xlu0 %v433
        %v460 = vpop.xlane.xlu0 %459
        %461 = vadd.xlane.f32.xlu0 %v434
        %v462 = vpop.xlane.xlu0 %461
        %463 = vadd.xlane.f32.xlu0 %v435
        %v464 = vpop.xlane.xlu0 %463
        %465 = vadd.xlane.f32.xlu0 %v436
        %v466 = vpop.xlane.xlu0 %465
        %467 = vadd.xlane.f32.xlu0 %v437
        %v468 = vpop.xlane.xlu0 %467
        %469 = vadd.xlane.f32.xlu0 %v438
        %v470 = vpop.xlane.xlu0 %469
        %v471 = vmul.f32 %v440, %v390
        %v472 = vmul.f32 %v442, %v390
        %v473 = vmul.f32 %v444, %v390
        %v474 = vmul.f32 %v446, %v390
        %v475 = vmul.f32 %v448, %v390
        %v476 = vmul.f32 %v450, %v390
        %v477 = vmul.f32 %v452, %v390
        %v478 = vmul.f32 %v454, %v390
        %v479 = vmul.f32 %v456, %v390
        %v480 = vmul.f32 %v458, %v390
        %v481 = vmul.f32 %v460, %v390
        %v482 = vmul.f32 %v462, %v390
        %v483 = vmul.f32 %v464, %v390
        %v484 = vmul.f32 %v466, %v390
        %v485 = vmul.f32 %v468, %v390
        %v486 = vmul.f32 %v470, %v390
        %v487 = vadd.f32 %v471, 1e-05
        %v488 = vadd.f32 %v472, 1e-05
        %v489 = vadd.f32 %v473, 1e-05
        %v490 = vadd.f32 %v474, 1e-05
        %v491 = vadd.f32 %v475, 1e-05
        %v492 = vadd.f32 %v476, 1e-05
        %v493 = vadd.f32 %v477, 1e-05
        %v494 = vadd.f32 %v478, 1e-05
        %v495 = vadd.f32 %v479, 1e-05
        %v496 = vadd.f32 %v480, 1e-05
        %v497 = vadd.f32 %v481, 1e-05
        %v498 = vadd.f32 %v482, 1e-05
        %v499 = vadd.f32 %v483, 1e-05
        %v500 = vadd.f32 %v484, 1e-05
        %v501 = vadd.f32 %v485, 1e-05
        %v502 = vadd.f32 %v486, 1e-05
        %v503 = vrsqrt.pop %v487
        %v504 = vrsqrt.pop %v488
        %v505 = vrsqrt.pop %v489
        %v506 = vrsqrt.pop %v490
        %v507 = vrsqrt.pop %v491
        %v508 = vrsqrt.pop %v492
        %v509 = vrsqrt.pop %v493
        %v510 = vrsqrt.pop %v494
        %v511 = vrsqrt.pop %v495
        %v512 = vrsqrt.pop %v496
        %v513 = vrsqrt.pop %v497
        %v514 = vrsqrt.pop %v498
        %v515 = vrsqrt.pop %v499
        %v516 = vrsqrt.pop %v500
        %v517 = vrsqrt.pop %v501
        %v518 = vrsqrt.pop %v502
        %v519 = vmul.f32 %v407, %v503
        %v520 = vmul.f32 %v408, %v504
        %v521 = vmul.f32 %v409, %v505
        %v522 = vmul.f32 %v410, %v506
        %v523 = vmul.f32 %v411, %v507
        %v524 = vmul.f32 %v412, %v508
        %v525 = vmul.f32 %v413, %v509
        %v526 = vmul.f32 %v414, %v510
        %v527 = vmul.f32 %v415, %v511
        %v528 = vmul.f32 %v416, %v512
        %v529 = vmul.f32 %v417, %v513
        %v530 = vmul.f32 %v418, %v514
        %v531 = vmul.f32 %v419, %v515
        %v532 = vmul.f32 %v420, %v516
        %v533 = vmul.f32 %v421, %v517
        %v534 = vmul.f32 %v422, %v518
        %v535 = vld [vmem:[%s1] sm:$0x1]
        %v537 = vlaneseq
        %v538 = vshrl.u32 %v537, 7
        %v539 = vsub.s32 0, %v538
        %v540 = vrot.slane %v535, %v539
        %v542 = vmul.f32 %v519, %v540
        %v543 = vmul.f32 %v520, %v540
        %v544 = vmul.f32 %v521, %v540
        %v545 = vmul.f32 %v522, %v540
        %v546 = vmul.f32 %v523, %v540
        %v547 = vmul.f32 %v524, %v540
        %v548 = vmul.f32 %v525, %v540
        %v549 = vmul.f32 %v526, %v540
        %v550 = vmul.f32 %v527, %v540
        %v551 = vmul.f32 %v528, %v540
        %v552 = vmul.f32 %v529, %v540
        %v553 = vmul.f32 %v530, %v540
        %v554 = vmul.f32 %v531, %v540
        %v555 = vmul.f32 %v532, %v540
        %v556 = vmul.f32 %v533, %v540
        %v557 = vmul.f32 %v534, %v540
        %v558 = vld [vmem:[#allocation5] sm:$0x1]
        %v560 = vlaneseq
        %v561 = vshrl.u32 %v560, 7
        %v562 = vsub.s32 0, %v561
        %v563 = vrot.slane %v558, %v562
        %v565 = vadd.f32 %v542, %v563
        %v566 = vadd.f32 %v543, %v563
        %v567 = vadd.f32 %v544, %v563
        %v568 = vadd.f32 %v545, %v563
        %v569 = vadd.f32 %v546, %v563
        %v570 = vadd.f32 %v547, %v563
        %v571 = vadd.f32 %v548, %v563
        %v572 = vadd.f32 %v549, %v563
        %v573 = vadd.f32 %v550, %v563
        %v574 = vadd.f32 %v551, %v563
        %v575 = vadd.f32 %v552, %v563
        %v576 = vadd.f32 %v553, %v563
        %v577 = vadd.f32 %v554, %v563
        %v578 = vadd.f32 %v555, %v563
        %v579 = vadd.f32 %v556, %v563
        %v580 = vadd.f32 %v557, %v563
        %v581 = vpack.c.bf16 %v566, %v565
        %v582 = vpack.c.bf16 %v568, %v567
        %v583 = vpack.c.bf16 %v570, %v569
        %v584 = vpack.c.bf16 %v572, %v571
        %v585 = vpack.c.bf16 %v574, %v573
        %v586 = vpack.c.bf16 %v576, %v575
        %v587 = vpack.c.bf16 %v578, %v577
        %v588 = vpack.c.bf16 %v580, %v579
        %v589 = vld [vmem:[#allocation7] sm:$0xff]
        %v590 = vld [vmem:[#allocation7 + $0x8] sm:$0xff]
        %v591 = vld [vmem:[#allocation7 + $0x10] sm:$0xff]
        %v592 = vld [vmem:[#allocation7 + $0x18] sm:$0xff]
        %v593 = vld [vmem:[#allocation7 + $0x20] sm:$0xff]
        %v594 = vld [vmem:[#allocation7 + $0x28] sm:$0xff]
        %v595 = vld [vmem:[#allocation7 + $0x30] sm:$0xff]
        %v596 = vld [vmem:[#allocation7 + $0x38] sm:$0xff]
        %v597 = vld [vmem:[#allocation7 + $0x40] sm:$0xff]
        %v598 = vld [vmem:[#allocation7 + $0x48] sm:$0xff]
        %v599 = vld [vmem:[#allocation7 + $0x50] sm:$0xff]
        %v600 = vld [vmem:[#allocation7 + $0x58] sm:$0xff]
        %v601 = vld [vmem:[#allocation7 + $0x60] sm:$0xff]
        %v602 = vld [vmem:[#allocation7 + $0x68] sm:$0xff]
        %v603 = vld [vmem:[#allocation7 + $0x70] sm:$0xff]
        %v604 = vld [vmem:[#allocation7 + $0x78] sm:$0xff]
        %v605 = vld [vmem:[%s4] sm:$0x3]
        %v607 = vlaneseq
        %v608 = vshrl.u32 %v607, 7
        %v609 = vsub.s32 0, %v608
        %v610 = vrot.slane %v605, %v609
        %v611 = vlaneseq
        %v612 = vshrl.u32 %v611, 7
        %v613 = vsub.s32 1, %v612
        %v614 = vrot.slane %v605, %v613
        %v633 = vunpack.c.l.b16 %v589
        %v634 = vunpack.c.h.b16 %v589
        %v635 = vunpack.c.l.b16 %v590
        %v636 = vunpack.c.h.b16 %v590
        %v637 = vunpack.c.l.b16 %v591
        %v638 = vunpack.c.h.b16 %v591
        %v639 = vunpack.c.l.b16 %v592
        %v640 = vunpack.c.h.b16 %v592
        %v641 = vunpack.c.l.b16 %v593
        %v642 = vunpack.c.h.b16 %v593
        %v643 = vunpack.c.l.b16 %v594
        %v644 = vunpack.c.h.b16 %v594
        %v645 = vunpack.c.l.b16 %v595
        %v646 = vunpack.c.h.b16 %v595
        %v647 = vunpack.c.l.b16 %v596
        %v648 = vunpack.c.h.b16 %v596
        %v649 = vunpack.c.l.b16 %v597
        %v650 = vunpack.c.h.b16 %v597
        %v651 = vunpack.c.l.b16 %v598
        %v652 = vunpack.c.h.b16 %v598
        %v653 = vunpack.c.l.b16 %v599
        %v654 = vunpack.c.h.b16 %v599
        %v655 = vunpack.c.l.b16 %v600
        %v656 = vunpack.c.h.b16 %v600
        %v657 = vunpack.c.l.b16 %v601
        %v658 = vunpack.c.h.b16 %v601
        %v659 = vunpack.c.l.b16 %v602
        %v660 = vunpack.c.h.b16 %v602
        %v661 = vunpack.c.l.b16 %v603
        %v662 = vunpack.c.h.b16 %v603
        %v663 = vunpack.c.l.b16 %v604
        %v664 = vunpack.c.h.b16 %v604
        %v665 = vpack.c.b16 %v635, %v633
        %v666 = vpack.c.b16 %v636, %v634
        %v667 = vpack.c.b16 %v639, %v637
        %v668 = vpack.c.b16 %v640, %v638
        %v669 = vpack.c.b16 %v643, %v641
        %v670 = vpack.c.b16 %v644, %v642
        %v671 = vpack.c.b16 %v647, %v645
        %v672 = vpack.c.b16 %v648, %v646
        %v673 = vpack.c.b16 %v651, %v649
        %v674 = vpack.c.b16 %v652, %v650
        %v675 = vpack.c.b16 %v655, %v653
        %v676 = vpack.c.b16 %v656, %v654
        %v677 = vpack.c.b16 %v659, %v657
        %v678 = vpack.c.b16 %v660, %v658
        %v679 = vpack.c.b16 %v663, %v661
        %v680 = vpack.c.b16 %v664, %v662
        %697 = vmatprep.subr.bf16.mxu0 %v680
        %698 = vmatpush1.bf16.msra.mxu0 %v679
        %699 = vmatprep.subr.bf16.mxu0 %v678
        %700 = vmatpush1.bf16.msra.mxu0 %v677
        %701 = vmatprep.subr.bf16.mxu0 %v676
        %702 = vmatpush1.bf16.msra.mxu0 %v675
        %703 = vmatprep.subr.bf16.mxu0 %v674
        %704 = vmatpush1.bf16.msra.mxu0 %v673
        %705 = vmatprep.subr.bf16.mxu0 %v672
        %706 = vmatpush1.bf16.msra.mxu0 %v671
        %707 = vmatprep.subr.bf16.mxu0 %v670
        %708 = vmatpush1.bf16.msra.mxu0 %v669
        %709 = vmatprep.subr.bf16.mxu0 %v668
        %710 = vmatpush1.bf16.msra.mxu0 %v667
        %711 = vmatprep.subr.bf16.mxu0 %v666
        %712 = vmatpush1.bf16.msra.mxu0 %v665
        %713 = vmatprep.subr.bf16.mxu0 0
        %714 = vmatpush2.bf16.msra.mxu0 0
        %715 = vmatprep.subr.bf16.mxu0 0
        %716 = vmatpush2.bf16.msra.mxu0 0
        %717 = vmatprep.subr.bf16.mxu0 0
        %718 = vmatpush2.bf16.msra.mxu0 0
        %719 = vmatprep.subr.bf16.mxu0 0
        %720 = vmatpush2.bf16.msra.mxu0 0
        %721 = vmatprep.subr.bf16.mxu0 0
        %722 = vmatpush2.bf16.msra.mxu0 0
        %723 = vmatprep.subr.bf16.mxu0 0
        %724 = vmatpush2.bf16.msra.mxu0 0
        %725 = vmatprep.subr.bf16.mxu0 0
        %726 = vmatpush2.bf16.msra.mxu0 0
        %727 = vmatprep.subr.bf16.mxu0 0
        %728 = vmatpush2.bf16.msra.mxu0 0
        %729 = vmatprep.mubr.bf16.mxu0 0
        %730 = vmatmul.mubr.bf16.gmra.mxu0 %v581
        %v731 = vpop.f32.mrf.mxu0
        %v732 = vadd.f32 %v610, %v731
        %v733 = vpop.f32.mrf.mxu0
        %v734 = vadd.f32 %v614, %v733
        %v735 = vpop.f32.mrf.mxu0
        %v736 = vadd.f32 %v610, %v735
        %v737 = vpop.f32.mrf.mxu0
        %v738 = vadd.f32 %v614, %v737
        %739 = vmatprep.mubr.bf16.mxu0 0
        %740 = vmatmul.mubr.bf16.gmra.mxu0 %v582
        %v741 = vpop.f32.mrf.mxu0
        %v742 = vadd.f32 %v610, %v741
        %v743 = vpop.f32.mrf.mxu0
        %v744 = vadd.f32 %v614, %v743
        %v745 = vpop.f32.mrf.mxu0
        %v746 = vadd.f32 %v610, %v745
        %v747 = vpop.f32.mrf.mxu0
        %v748 = vadd.f32 %v614, %v747
        %749 = vmatprep.mubr.bf16.mxu0 0
        %750 = vmatmul.mubr.bf16.gmra.mxu0 %v583
        %v751 = vpop.f32.mrf.mxu0
        %v752 = vadd.f32 %v610, %v751
        %v753 = vpop.f32.mrf.mxu0
        %v754 = vadd.f32 %v614, %v753
        %v755 = vpop.f32.mrf.mxu0
        %v756 = vadd.f32 %v610, %v755
        %v757 = vpop.f32.mrf.mxu0
        %v758 = vadd.f32 %v614, %v757
        %759 = vmatprep.mubr.bf16.mxu0 0
        %760 = vmatmul.mubr.bf16.gmra.mxu0 %v584
        %v761 = vpop.f32.mrf.mxu0
        %v762 = vadd.f32 %v610, %v761
        %v763 = vpop.f32.mrf.mxu0
        %v764 = vadd.f32 %v614, %v763
        %v765 = vpop.f32.mrf.mxu0
        %v766 = vadd.f32 %v610, %v765
        %v767 = vpop.f32.mrf.mxu0
        %v768 = vadd.f32 %v614, %v767
        %769 = vmatprep.mubr.bf16.mxu0 0
        %770 = vmatmul.mubr.bf16.gmra.mxu0 %v585
        %v771 = vpop.f32.mrf.mxu0
        %v772 = vadd.f32 %v610, %v771
        %v773 = vpop.f32.mrf.mxu0
        %v774 = vadd.f32 %v614, %v773
        %v775 = vpop.f32.mrf.mxu0
        %v776 = vadd.f32 %v610, %v775
        %v777 = vpop.f32.mrf.mxu0
        %v778 = vadd.f32 %v614, %v777
        %779 = vmatprep.mubr.bf16.mxu0 0
        %780 = vmatmul.mubr.bf16.gmra.mxu0 %v586
        %v781 = vpop.f32.mrf.mxu0
        %v782 = vadd.f32 %v610, %v781
        %v783 = vpop.f32.mrf.mxu0
        %v784 = vadd.f32 %v614, %v783
        %v785 = vpop.f32.mrf.mxu0
        %v786 = vadd.f32 %v610, %v785
        %v787 = vpop.f32.mrf.mxu0
        %v788 = vadd.f32 %v614, %v787
        %789 = vmatprep.mubr.bf16.mxu0 0
        %790 = vmatmul.mubr.bf16.gmra.mxu0 %v587
        %v791 = vpop.f32.mrf.mxu0
        %v792 = vadd.f32 %v610, %v791
        %v793 = vpop.f32.mrf.mxu0
        %v794 = vadd.f32 %v614, %v793
        %v795 = vpop.f32.mrf.mxu0
        %v796 = vadd.f32 %v610, %v795
        %v797 = vpop.f32.mrf.mxu0
        %v798 = vadd.f32 %v614, %v797
        %799 = vmatprep.mubr.bf16.mxu0 0
        %800 = vmatmul.mubr.bf16.gmra.mxu0 %v588
        %v801 = vpop.f32.mrf.mxu0
        %v802 = vadd.f32 %v610, %v801
        %v803 = vpop.f32.mrf.mxu0
        %v804 = vadd.f32 %v614, %v803
        %v805 = vpop.f32.mrf.mxu0
        %v806 = vadd.f32 %v610, %v805
        %v807 = vpop.f32.mrf.mxu0
        %v808 = vadd.f32 %v614, %v807
        %809 = vdwg.mxu0
        %v810 = vmul.f32 %v732, 0.5
        %v811 = vmul.f32 %v734, 0.5
        %v812 = vmul.f32 %v736, 0.5
        %v813 = vmul.f32 %v738, 0.5
        %v814 = vmul.f32 %v742, 0.5
        %v815 = vmul.f32 %v744, 0.5
        %v816 = vmul.f32 %v746, 0.5
        %v817 = vmul.f32 %v748, 0.5
        %v818 = vmul.f32 %v752, 0.5
        %v819 = vmul.f32 %v754, 0.5
        %v820 = vmul.f32 %v756, 0.5
        %v821 = vmul.f32 %v758, 0.5
        %v822 = vmul.f32 %v762, 0.5
        %v823 = vmul.f32 %v764, 0.5
        %v824 = vmul.f32 %v766, 0.5
        %v825 = vmul.f32 %v768, 0.5
        %v826 = vmul.f32 %v772, 0.5
        %v827 = vmul.f32 %v774, 0.5
        %v828 = vmul.f32 %v776, 0.5
        %v829 = vmul.f32 %v778, 0.5
        %v830 = vmul.f32 %v782, 0.5
        %v831 = vmul.f32 %v784, 0.5
        %v832 = vmul.f32 %v786, 0.5
        %v833 = vmul.f32 %v788, 0.5
        %v834 = vmul.f32 %v792, 0.5
        %v835 = vmul.f32 %v794, 0.5
        %v836 = vmul.f32 %v796, 0.5
        %v837 = vmul.f32 %v798, 0.5
        %v838 = vmul.f32 %v802, 0.5
        %v839 = vmul.f32 %v804, 0.5
        %v840 = vmul.f32 %v806, 0.5
        %v841 = vmul.f32 %v808, 0.5
        %v842 = vmul.f32 %v732, 0.70710677
        %v843 = vmul.f32 %v734, 0.70710677
        %v844 = vmul.f32 %v736, 0.70710677
        %v845 = vmul.f32 %v738, 0.70710677
        %v846 = vmul.f32 %v742, 0.70710677
        %v847 = vmul.f32 %v744, 0.70710677
        %v848 = vmul.f32 %v746, 0.70710677
        %v849 = vmul.f32 %v748, 0.70710677
        %v850 = vmul.f32 %v752, 0.70710677
        %v851 = vmul.f32 %v754, 0.70710677
        %v852 = vmul.f32 %v756, 0.70710677
        %v853 = vmul.f32 %v758, 0.70710677
        %v854 = vmul.f32 %v762, 0.70710677
        %v855 = vmul.f32 %v764, 0.70710677
        %v856 = vmul.f32 %v766, 0.70710677
        %v857 = vmul.f32 %v768, 0.70710677
        %v858 = vmul.f32 %v772, 0.70710677
        %v859 = vmul.f32 %v774, 0.70710677
        %v860 = vmul.f32 %v776, 0.70710677
        %v861 = vmul.f32 %v778, 0.70710677
        %v862 = vmul.f32 %v782, 0.70710677
        %v863 = vmul.f32 %v784, 0.70710677
        %v864 = vmul.f32 %v786, 0.70710677
        %v865 = vmul.f32 %v788, 0.70710677
        %v866 = vmul.f32 %v792, 0.70710677
        %v867 = vmul.f32 %v794, 0.70710677
        %v868 = vmul.f32 %v796, 0.70710677
        %v869 = vmul.f32 %v798, 0.70710677
        %v870 = vmul.f32 %v802, 0.70710677
        %v871 = vmul.f32 %v804, 0.70710677
        %v872 = vmul.f32 %v806, 0.70710677
        %v873 = vmul.f32 %v808, 0.70710677
        %v874 = verf.f32.pop %v842
        %v875 = verf.f32.pop %v843
        %v876 = verf.f32.pop %v844
        %v877 = verf.f32.pop %v845
        %v878 = verf.f32.pop %v846
        %v879 = verf.f32.pop %v847
        %v880 = verf.f32.pop %v848
        %v881 = verf.f32.pop %v849
        %v882 = verf.f32.pop %v850
        %v883 = verf.f32.pop %v851
        %v884 = verf.f32.pop %v852
        %v885 = verf.f32.pop %v853
        %v886 = verf.f32.pop %v854
        %v887 = verf.f32.pop %v855
        %v888 = verf.f32.pop %v856
        %v889 = verf.f32.pop %v857
        %v890 = verf.f32.pop %v858
        %v891 = verf.f32.pop %v859
        %v892 = verf.f32.pop %v860
        %v893 = verf.f32.pop %v861
        %v894 = verf.f32.pop %v862
        %v895 = verf.f32.pop %v863
        %v896 = verf.f32.pop %v864
        %v897 = verf.f32.pop %v865
        %v898 = verf.f32.pop %v866
        %v899 = verf.f32.pop %v867
        %v900 = verf.f32.pop %v868
        %v901 = verf.f32.pop %v869
        %v902 = verf.f32.pop %v870
        %v903 = verf.f32.pop %v871
        %v904 = verf.f32.pop %v872
        %v905 = verf.f32.pop %v873
        %v906 = vadd.f32 %v874, 1.0
        %v907 = vadd.f32 %v875, 1.0
        %v908 = vadd.f32 %v876, 1.0
        %v909 = vadd.f32 %v877, 1.0
        %v910 = vadd.f32 %v878, 1.0
        %v911 = vadd.f32 %v879, 1.0
        %v912 = vadd.f32 %v880, 1.0
        %v913 = vadd.f32 %v881, 1.0
        %v914 = vadd.f32 %v882, 1.0
        %v915 = vadd.f32 %v883, 1.0
        %v916 = vadd.f32 %v884, 1.0
        %v917 = vadd.f32 %v885, 1.0
        %v918 = vadd.f32 %v886, 1.0
        %v919 = vadd.f32 %v887, 1.0
        %v920 = vadd.f32 %v888, 1.0
        %v921 = vadd.f32 %v889, 1.0
        %v922 = vadd.f32 %v890, 1.0
        %v923 = vadd.f32 %v891, 1.0
        %v924 = vadd.f32 %v892, 1.0
        %v925 = vadd.f32 %v893, 1.0
        %v926 = vadd.f32 %v894, 1.0
        %v927 = vadd.f32 %v895, 1.0
        %v928 = vadd.f32 %v896, 1.0
        %v929 = vadd.f32 %v897, 1.0
        %v930 = vadd.f32 %v898, 1.0
        %v931 = vadd.f32 %v899, 1.0
        %v932 = vadd.f32 %v900, 1.0
        %v933 = vadd.f32 %v901, 1.0
        %v934 = vadd.f32 %v902, 1.0
        %v935 = vadd.f32 %v903, 1.0
        %v936 = vadd.f32 %v904, 1.0
        %v937 = vadd.f32 %v905, 1.0
        %v938 = vmul.f32 %v810, %v906
        %v939 = vmul.f32 %v811, %v907
        %v940 = vmul.f32 %v812, %v908
        %v941 = vmul.f32 %v813, %v909
        %v942 = vmul.f32 %v814, %v910
        %v943 = vmul.f32 %v815, %v911
        %v944 = vmul.f32 %v816, %v912
        %v945 = vmul.f32 %v817, %v913
        %v946 = vmul.f32 %v818, %v914
        %v947 = vmul.f32 %v819, %v915
        %v948 = vmul.f32 %v820, %v916
        %v949 = vmul.f32 %v821, %v917
        %v950 = vmul.f32 %v822, %v918
        %v951 = vmul.f32 %v823, %v919
        %v952 = vmul.f32 %v824, %v920
        %v953 = vmul.f32 %v825, %v921
        %v954 = vmul.f32 %v826, %v922
        %v955 = vmul.f32 %v827, %v923
        %v956 = vmul.f32 %v828, %v924
        %v957 = vmul.f32 %v829, %v925
        %v958 = vmul.f32 %v830, %v926
        %v959 = vmul.f32 %v831, %v927
        %v960 = vmul.f32 %v832, %v928
        %v961 = vmul.f32 %v833, %v929
        %v962 = vmul.f32 %v834, %v930
        %v963 = vmul.f32 %v835, %v931
        %v964 = vmul.f32 %v836, %v932
        %v965 = vmul.f32 %v837, %v933
        %v966 = vmul.f32 %v838, %v934
        %v967 = vmul.f32 %v839, %v935
        %v968 = vmul.f32 %v840, %v936
        %v969 = vmul.f32 %v841, %v937
        %v970 = vpack.c.bf16 %v940, %v938
        %v971 = vpack.c.bf16 %v941, %v939
        %v972 = vpack.c.bf16 %v944, %v942
        %v973 = vpack.c.bf16 %v945, %v943
        %v974 = vpack.c.bf16 %v948, %v946
        %v975 = vpack.c.bf16 %v949, %v947
        %v976 = vpack.c.bf16 %v952, %v950
        %v977 = vpack.c.bf16 %v953, %v951
        %v978 = vpack.c.bf16 %v956, %v954
        %v979 = vpack.c.bf16 %v957, %v955
        %v980 = vpack.c.bf16 %v960, %v958
        %v981 = vpack.c.bf16 %v961, %v959
        %v982 = vpack.c.bf16 %v964, %v962
        %v983 = vpack.c.bf16 %v965, %v963
        %v984 = vpack.c.bf16 %v968, %v966
        %v985 = vpack.c.bf16 %v969, %v967
        %v986 = vld [vmem:[#allocation8] sm:$0xf]
        %v987 = vld [vmem:[#allocation8 + $0x4] sm:$0xf]
        %v988 = vld [vmem:[#allocation8 + $0x8] sm:$0xf]
        %v989 = vld [vmem:[#allocation8 + $0xc] sm:$0xf]
        %v990 = vld [vmem:[#allocation8 + $0x10] sm:$0xf]
        %v991 = vld [vmem:[#allocation8 + $0x14] sm:$0xf]
        %v992 = vld [vmem:[#allocation8 + $0x18] sm:$0xf]
        %v993 = vld [vmem:[#allocation8 + $0x1c] sm:$0xf]
        %v994 = vld [vmem:[#allocation8 + $0x20] sm:$0xf]
        %v995 = vld [vmem:[#allocation8 + $0x24] sm:$0xf]
        %v996 = vld [vmem:[#allocation8 + $0x28] sm:$0xf]
        %v997 = vld [vmem:[#allocation8 + $0x2c] sm:$0xf]
        %v998 = vld [vmem:[#allocation8 + $0x30] sm:$0xf]
        %v999 = vld [vmem:[#allocation8 + $0x34] sm:$0xf]
        %v1000 = vld [vmem:[#allocation8 + $0x38] sm:$0xf]
        %v1001 = vld [vmem:[#allocation8 + $0x3c] sm:$0xf]
        %v1002 = vld [vmem:[#allocation8 + $0x40] sm:$0xf]
        %v1003 = vld [vmem:[#allocation8 + $0x44] sm:$0xf]
        %v1004 = vld [vmem:[#allocation8 + $0x48] sm:$0xf]
        %v1005 = vld [vmem:[#allocation8 + $0x4c] sm:$0xf]
        %v1006 = vld [vmem:[#allocation8 + $0x50] sm:$0xf]
        %v1007 = vld [vmem:[#allocation8 + $0x54] sm:$0xf]
        %v1008 = vld [vmem:[#allocation8 + $0x58] sm:$0xf]
        %v1009 = vld [vmem:[#allocation8 + $0x5c] sm:$0xf]
        %v1010 = vld [vmem:[#allocation8 + $0x60] sm:$0xf]
        %v1011 = vld [vmem:[#allocation8 + $0x64] sm:$0xf]
        %v1012 = vld [vmem:[#allocation8 + $0x68] sm:$0xf]
        %v1013 = vld [vmem:[#allocation8 + $0x6c] sm:$0xf]
        %v1014 = vld [vmem:[#allocation8 + $0x70] sm:$0xf]
        %v1015 = vld [vmem:[#allocation8 + $0x74] sm:$0xf]
        %v1016 = vld [vmem:[#allocation8 + $0x78] sm:$0xf]
        %v1017 = vld [vmem:[#allocation8 + $0x7c] sm:$0xf]
        %v1018 = vld [vmem:[%s6] sm:$0x1]
        %v1020 = vlaneseq
        %v1021 = vshrl.u32 %v1020, 7
        %v1022 = vsub.s32 0, %v1021
        %v1023 = vrot.slane %v1018, %v1022
        %v1057 = vunpack.c.l.b16 %v986
        %v1058 = vunpack.c.l.b16 %v987
        %v1059 = vunpack.c.l.b16 %v988
        %v1060 = vunpack.c.l.b16 %v989
        %v1061 = vunpack.c.l.b16 %v990
        %v1062 = vunpack.c.l.b16 %v991
        %v1063 = vunpack.c.l.b16 %v992
        %v1064 = vunpack.c.l.b16 %v993
        %v1065 = vunpack.c.l.b16 %v994
        %v1066 = vunpack.c.l.b16 %v995
        %v1067 = vunpack.c.l.b16 %v996
        %v1068 = vunpack.c.l.b16 %v997
        %v1069 = vunpack.c.l.b16 %v998
        %v1070 = vunpack.c.l.b16 %v999
        %v1071 = vunpack.c.l.b16 %v1000
        %v1072 = vunpack.c.l.b16 %v1001
        %v1073 = vunpack.c.l.b16 %v1002
        %v1074 = vunpack.c.l.b16 %v1003
        %v1075 = vunpack.c.l.b16 %v1004
        %v1076 = vunpack.c.l.b16 %v1005
        %v1077 = vunpack.c.l.b16 %v1006
        %v1078 = vunpack.c.l.b16 %v1007
        %v1079 = vunpack.c.l.b16 %v1008
        %v1080 = vunpack.c.l.b16 %v1009
        %v1081 = vunpack.c.l.b16 %v1010
        %v1082 = vunpack.c.l.b16 %v1011
        %v1083 = vunpack.c.l.b16 %v1012
        %v1084 = vunpack.c.l.b16 %v1013
        %v1085 = vunpack.c.l.b16 %v1014
        %v1086 = vunpack.c.l.b16 %v1015
        %v1087 = vunpack.c.l.b16 %v1016
        %v1088 = vunpack.c.l.b16 %v1017
        %v1089 = vpack.c.b16 %v1058, %v1057
        %v1090 = vpack.c.b16 %v1060, %v1059
        %v1091 = vpack.c.b16 %v1062, %v1061
        %v1092 = vpack.c.b16 %v1064, %v1063
        %v1093 = vpack.c.b16 %v1066, %v1065
        %v1094 = vpack.c.b16 %v1068, %v1067
        %v1095 = vpack.c.b16 %v1070, %v1069
        %v1096 = vpack.c.b16 %v1072, %v1071
        %v1097 = vpack.c.b16 %v1074, %v1073
        %v1098 = vpack.c.b16 %v1076, %v1075
        %v1099 = vpack.c.b16 %v1078, %v1077
        %v1100 = vpack.c.b16 %v1080, %v1079
        %v1101 = vpack.c.b16 %v1082, %v1081
        %v1102 = vpack.c.b16 %v1084, %v1083
        %v1103 = vpack.c.b16 %v1086, %v1085
        %v1104 = vpack.c.b16 %v1088, %v1087
        %1121 = vmatprep.subr.bf16.mxu0 0
        %1122 = vmatpush1.bf16.msra.mxu0 %v1096
        %1123 = vmatprep.subr.bf16.mxu0 0
        %1124 = vmatpush1.bf16.msra.mxu0 %v1095
        %1125 = vmatprep.subr.bf16.mxu0 0
        %1126 = vmatpush1.bf16.msra.mxu0 %v1094
        %1127 = vmatprep.subr.bf16.mxu0 0
        %1128 = vmatpush1.bf16.msra.mxu0 %v1093
        %1129 = vmatprep.subr.bf16.mxu0 0
        %1130 = vmatpush1.bf16.msra.mxu0 %v1092
        %1131 = vmatprep.subr.bf16.mxu0 0
        %1132 = vmatpush1.bf16.msra.mxu0 %v1091
        %1133 = vmatprep.subr.bf16.mxu0 0
        %1134 = vmatpush1.bf16.msra.mxu0 %v1090
        %1135 = vmatprep.subr.bf16.mxu0 0
        %1136 = vmatpush1.bf16.msra.mxu0 %v1089
        %1137 = vmatprep.subr.bf16.mxu0 0
        %1138 = vmatpush2.bf16.msra.mxu0 %v1104
        %1139 = vmatprep.subr.bf16.mxu0 0
        %1140 = vmatpush2.bf16.msra.mxu0 %v1103
        %1141 = vmatprep.subr.bf16.mxu0 0
        %1142 = vmatpush2.bf16.msra.mxu0 %v1102
        %1143 = vmatprep.subr.bf16.mxu0 0
        %1144 = vmatpush2.bf16.msra.mxu0 %v1101
        %1145 = vmatprep.subr.bf16.mxu0 0
        %1146 = vmatpush2.bf16.msra.mxu0 %v1100
        %1147 = vmatprep.subr.bf16.mxu0 0
        %1148 = vmatpush2.bf16.msra.mxu0 %v1099
        %1149 = vmatprep.subr.bf16.mxu0 0
        %1150 = vmatpush2.bf16.msra.mxu0 %v1098
        %1151 = vmatprep.subr.bf16.mxu0 0
        %1152 = vmatpush2.bf16.msra.mxu0 %v1097
        %1153 = vmatprep.mubr.bf16.mxu0 %v971
        %1154 = vmatmul.mubr.bf16.gmra.mxu0 %v970
        %v1155 = vpop.f32.mrf.mxu0
        %v1156 = vadd.f32 %v1023, %v1155
        %v1157 = vpop.f32.mrf.mxu0
        %v1158 = vpop.f32.mrf.mxu0
        %v1159 = vadd.f32 %v1023, %v1158
        %v1160 = vpop.f32.mrf.mxu0
        %1161 = vmatprep.mubr.bf16.mxu0 %v973
        %1162 = vmatmul.mubr.bf16.gmra.mxu0 %v972
        %v1163 = vpop.f32.mrf.mxu0
        %v1164 = vadd.f32 %v1023, %v1163
        %v1165 = vpop.f32.mrf.mxu0
        %v1166 = vpop.f32.mrf.mxu0
        %v1167 = vadd.f32 %v1023, %v1166
        %v1168 = vpop.f32.mrf.mxu0
        %1169 = vmatprep.mubr.bf16.mxu0 %v975
        %1170 = vmatmul.mubr.bf16.gmra.mxu0 %v974
        %v1171 = vpop.f32.mrf.mxu0
        %v1172 = vadd.f32 %v1023, %v1171
        %v1173 = vpop.f32.mrf.mxu0
        %v1174 = vpop.f32.mrf.mxu0
        %v1175 = vadd.f32 %v1023, %v1174
        %v1176 = vpop.f32.mrf.mxu0
        %1177 = vmatprep.mubr.bf16.mxu0 %v977
        %1178 = vmatmul.mubr.bf16.gmra.mxu0 %v976
        %v1179 = vpop.f32.mrf.mxu0
        %v1180 = vadd.f32 %v1023, %v1179
        %v1181 = vpop.f32.mrf.mxu0
        %v1182 = vpop.f32.mrf.mxu0
        %v1183 = vadd.f32 %v1023, %v1182
        %v1184 = vpop.f32.mrf.mxu0
        %1185 = vmatprep.mubr.bf16.mxu0 %v979
        %1186 = vmatmul.mubr.bf16.gmra.mxu0 %v978
        %v1187 = vpop.f32.mrf.mxu0
        %v1188 = vadd.f32 %v1023, %v1187
        %v1189 = vpop.f32.mrf.mxu0
        %v1190 = vpop.f32.mrf.mxu0
        %v1191 = vadd.f32 %v1023, %v1190
        %v1192 = vpop.f32.mrf.mxu0
        %1193 = vmatprep.mubr.bf16.mxu0 %v981
        %1194 = vmatmul.mubr.bf16.gmra.mxu0 %v980
        %v1195 = vpop.f32.mrf.mxu0
        %v1196 = vadd.f32 %v1023, %v1195
        %v1197 = vpop.f32.mrf.mxu0
        %v1198 = vpop.f32.mrf.mxu0
        %v1199 = vadd.f32 %v1023, %v1198
        %v1200 = vpop.f32.mrf.mxu0
        %1201 = vmatprep.mubr.bf16.mxu0 %v983
        %1202 = vmatmul.mubr.bf16.gmra.mxu0 %v982
        %v1203 = vpop.f32.mrf.mxu0
        %v1204 = vadd.f32 %v1023, %v1203
        %v1205 = vpop.f32.mrf.mxu0
        %v1206 = vpop.f32.mrf.mxu0
        %v1207 = vadd.f32 %v1023, %v1206
        %v1208 = vpop.f32.mrf.mxu0
        %1209 = vmatprep.mubr.bf16.mxu0 %v985
        %1210 = vmatmul.mubr.bf16.gmra.mxu0 %v984
        %v1211 = vpop.f32.mrf.mxu0
        %v1212 = vadd.f32 %v1023, %v1211
        %v1213 = vpop.f32.mrf.mxu0
        %v1214 = vpop.f32.mrf.mxu0
        %v1215 = vadd.f32 %v1023, %v1214
        %v1216 = vpop.f32.mrf.mxu0
        %1217 = vdwg.mxu0
        %1218 = vst [vmem:[%s338] sm:$0xff] %v1156
        %1219 = vst [vmem:[%s338 + $0x8] sm:$0xff] %v1159
        %1220 = vst [vmem:[%s338 + $0x10] sm:$0xff] %v1164
        %1221 = vst [vmem:[%s338 + $0x18] sm:$0xff] %v1167
        %1222 = vst [vmem:[%s338 + $0x20] sm:$0xff] %v1172
        %1223 = vst [vmem:[%s338 + $0x28] sm:$0xff] %v1175
        %1224 = vst [vmem:[%s338 + $0x30] sm:$0xff] %v1180
        %1225 = vst [vmem:[%s338 + $0x38] sm:$0xff] %v1183
        %1226 = vst [vmem:[%s338 + $0x40] sm:$0xff] %v1188
        %1227 = vst [vmem:[%s338 + $0x48] sm:$0xff] %v1191
        %1228 = vst [vmem:[%s338 + $0x50] sm:$0xff] %v1196
        %1229 = vst [vmem:[%s338 + $0x58] sm:$0xff] %v1199
        %1230 = vst [vmem:[%s338 + $0x60] sm:$0xff] %v1204
        %1231 = vst [vmem:[%s338 + $0x68] sm:$0xff] %v1207
        %1232 = vst [vmem:[%s338 + $0x70] sm:$0xff] %v1212
        %1233 = vst [vmem:[%s338 + $0x78] sm:$0xff] %v1215
        %s1234 = sand.u32 %s186, 1
        %s1235 = scalar_lea.sflag [#allocation4], %s1234
        %s1236 = sand.u32 %s186, 1
        %s1237 = smul.addr %s1236, 128
        %s1238 = scalar_lea.vmem [#allocation10], %s1237
        // Predicated region
        $region65: #{tpu_custom_call.1} parent=47 // pred_check
          %p1239 = pneg %p196
        $region66: #{tpu_custom_call.1} parent=47 // pred_check_branch
          %1241 = sbr.rel (%p1239) target = $region68
        $region67: #{tpu_custom_call.1} parent=47 // pred_region
          %s1242 = smul.u32 16, %s26
          %s1244 = ssub.s32 2048, 2048
          %1245 = vsyncadd %s1235, %s1244
          %s1246 = smul.addr %s1242, 128
          %s1247 = scalar_lea.hbm %s7, %s1246
          %s1248 = sshll.u32 %s1238, 4
          %s1249 = int_to_ptr.vmem [resolvable:$true] %s1248
          %1254 = dma.vmem_to_hbm [thread:$0]  %s1249, 2048, %s1247, %s1235, 128, 128, 8
        $region68: #{tpu_custom_call.1} parent=47 // pred_fallthru
          _
      $region48: #{tpu_custom_call.1} parent=5 // pred_fallthru
        _
      %p1255 = scmp.le.s32.totalorder 2, %s21
      // Predicated region
      $region69: #{tpu_custom_call.1} parent=5 // pred_check
        %p1256 = pneg %p1255
      $region70: #{tpu_custom_call.1} parent=5 // pred_check_branch
        %1258 = sbr.rel (%p1256) target = $region72
      $region71: #{tpu_custom_call.1} parent=5 // pred_region
        %s1259 = ssub.s32 %s21, 2
        // Predicated region
        $region73: #{tpu_custom_call.1} parent=71 // pred_check
          %p1260 = pneg %p202
        $region74: #{tpu_custom_call.1} parent=71 // pred_check_branch
          %1262 = sbr.rel (%p1260) target = $region76
        $region75: #{tpu_custom_call.1} parent=71 // pred_region
          %s1263 = sand.u32 %s187, 1
          %s1264 = scalar_lea.sflag [#allocation4], %s1263
          %s1265 = sand.u32 %s187, 1
          %s1266 = smul.addr %s1265, 128
          %s1267 = scalar_lea.vmem [#allocation10], %s1266
          %1268 = dma.done %s1264, 2048
        $region76: #{tpu_custom_call.1} parent=71 // pred_fallthru
          _
      $region72: #{tpu_custom_call.1} parent=5 // pred_fallthru
        _
    $region6: #{tpu_custom_call.1} parent=1 // loop_footer
      %s25 = sadd.s32 1, %s21
    $region7: #{tpu_custom_call.1} parent=1 // loop_footer_branch
      %20 = sbr.rel target = $region3
    $region8: #{tpu_custom_call.1} parent=1 // loop_exit
      _
    %1269 = vsyncpa [#allocation3], 1
    %s1270 = scalar_lea.sflag [#allocation3], 1
    %1271 = vsyncpa %s1270, 1
    %1272 = vsyncpa [#allocation6], 1
    %1273 = vsyncpa [#allocation9], 1
    %1274 = vsyncpa [#allocation4], 1
    %s1275 = scalar_lea.sflag [#allocation4], 1
    %1276 = vsyncpa %s1275, 1

// kernel: tpu_custom_call.1
$region0: #{tpu_custom_call.1}
  #allocation0 [shape = 'u32[]', space=smem, size = 0x4, offset = 0x4, fixed_abs, tag = 'smem constant byte address 0x4 - core index']
  #allocation1 [shape = 'u32[144,128]{1,0:T(1,128)}', space=vmem, size = 0x12000, scoped, tag = 'internal scratch']
  %s0 = inlined_call_operand.hbm [shape: f32[256,128], index: 0, kind: input, shape index: {}]
  %s1 = inlined_call_operand.vmem [shape: f32[1,128], index: 1, kind: input, shape index: {}]
  %s2 = inlined_call_operand.hbm [shape: f32[1,128], index: 2, kind: input, shape index: {}]
  %s3 = inlined_call_operand.hbm [shape: bf16[128,256], index: 3, kind: input, shape index: {}]
  %s4 = inlined_call_operand.vmem [shape: f32[1,256], index: 4, kind: input, shape index: {}]
  %s5 = inlined_call_operand.hbm [shape: bf16[256,128], index: 5, kind: input, shape index: {}]
  %s6 = inlined_call_operand.vmem [shape: f32[1,128], index: 6, kind: input, shape index: {}]
  %s7 = inlined_call_operand.hbm [shape: f32[256,128], index: 7, kind: output, shape index: {}]
  %s8 = sld [smem:[#allocation0]]
  $region77: #{tpu_custom_call.1} parent=0
    _
  %s10 = ssub.s32 1, %s8
  %s11 = scalar_select 0, %s10, %s8
  $region1: #{tpu_custom_call.1} parent=0
    #allocation2 [shape = 'u8[131072]{0}', space=vmem, size = 0x20000, scoped, tag = 'input window, operand 0']
    #allocation3 [shape = 's32[2]{0}', space=sflag, size = 0x8, scoped, tag = 'scoped memory for tpu_custom_call.1']
    #allocation4 [shape = 's32[2]{0}', space=sflag, size = 0x8, scoped, tag = 'scoped memory for tpu_custom_call.1']
    #allocation5 [shape = 'u8[512]{0}', space=vmem, size = 0x400, scoped, tag = 'input window, operand 2, single buffered']
    #allocation6 [shape = 's32[1]{0}', space=sflag, size = 0x4, scoped, tag = 'scoped memory for tpu_custom_call.1']
    #allocation7 [shape = 'u8[65536]{0}', space=vmem, size = 0x10000, scoped, tag = 'input window, operand 3, single buffered']
    #allocation8 [shape = 'u8[65536]{0}', space=vmem, size = 0x10000, scoped, tag = 'input window, operand 5, single buffered']
    #allocation9 [shape = 's32[1]{0}', space=sflag, size = 0x4, scoped, tag = 'scoped memory for tpu_custom_call.1']
    #allocation10 [shape = 'u8[131072]{0}', space=vmem, size = 0x20000, scoped, tag = 'output window, operand 0']
    %12 = vsyncpa [#allocation3], 0
    %s13 = scalar_lea.sflag [#allocation3], 1
    %14 = vsyncpa %s13, 0
    %15 = vsyncpa [#allocation6], 0
    %16 = vsyncpa [#allocation9], 0
    %17 = vsyncpa [#allocation4], 0
    %s18 = scalar_lea.sflag [#allocation4], 1
    %19 = vsyncpa %s18, 0
    loop: start=0, step=1, limit=4
    $region2: #{tpu_custom_call.1} parent=1 // loop_pre_header
      _
    $region3: #{tpu_custom_call.1} parent=1 // loop_header
      %s21 = sphi 0, %s25
      %p22 = scmp.ge.s32.totalorder %s21, 4
      %s31 = sphi 0, %s33
      %s34 = sphi 0, %s31
      %s35 = sphi 0, %s34
      %s51 = sphi 0, %s35
      %s55 = sphi 0, %s55
      %s57 = sphi 0, %s55
      %s58 = sphi 0, %s57
      %s72 = sphi 0, %s58
      %s76 = sphi 0, %s76
      %s78 = sphi 0, %s76
      %s79 = sphi 0, %s78
      %s93 = sphi 0, %s79
      %s97 = sphi 0, %s97
      %s99 = sphi 0, %s97
      %s100 = sphi 0, %s99
      %s114 = sphi 0, %s100
      %s118 = sphi 0, %s118
      %s120 = sphi 0, %s118
      %s121 = sphi 0, %s120
      %s135 = sphi 0, %s121
      %s139 = sphi 0, %s139
      %s141 = sphi 0, %s139
      %s142 = sphi 0, %s141
      %s156 = sphi 0, %s142
      %s160 = sphi 0, %s160
      %s162 = sphi 0, %s160
      %s163 = sphi 0, %s162
      %s177 = sphi 0, %s163
      %s183 = sphi 0, %s185
      %s186 = sphi 0, %s183
      %s187 = sphi 0, %s186
      %s203 = sphi 0, %s187
    $region4: #{tpu_custom_call.1} parent=1 // loop_header_branch
      %24 = sbr.rel (%p22) target = $region8
    $region5: #{tpu_custom_call.1} parent=1 // loop_body
      %s26 = ssub.s32 %s21, 1
      %s27 = ssub.s32 %s21, 2
      %s28 = sadd.s32 %s21, 1
      %s29 = ssub.s32 %s21, %s28
      %p30 = scmp.eq.s32.totalorder %s29, 0
      %s32 = sadd.s32 %s31, 1
      %s33 = scalar_select %p30, %s31, %s32
      %p36 = pneg %p30
      %p37 = scmp.eq.s32.totalorder %s21, 1
      %p38 = por %p36, %p37
      %p39 = scmp.ne.s32.totalorder %s31, %s34
      %p40 = scmp.eq.s32.totalorder %s21, 0
      %p41 = por %p39, %p40
      %p42 = scmp.ne.s32.totalorder %s31, %s34
      %p43 = scmp.eq.s32.totalorder %s26, 1
      %p44 = por %p42, %p43
      %p45 = scmp.ne.s32.totalorder %s34, %s35
      %p46 = scmp.eq.s32.totalorder %s26, 0
      %p47 = por %p45, %p46
      %p48 = scmp.ne.s32.totalorder %s34, %s35
      %p49 = scmp.eq.s32.totalorder %s27, 1
      %p50 = por %p48, %p49
      %p52 = scmp.ne.s32.totalorder %s35, %s51
      %p53 = scmp.eq.s32.totalorder %s27, 0
      %p54 = por %p52, %p53
      %s56 = sadd.s32 %s55, 1
      %p59 = scmp.eq.s32.totalorder %s21, 1
      %p60 = scmp.ne.s32.totalorder %s55, %s57
      %p61 = scmp.eq.s32.totalorder %s21, 0
      %p62 = por %p60, %p61
      %p63 = scmp.ne.s32.totalorder %s55, %s57
      %p64 = scmp.eq.s32.totalorder %s26, 1
      %p65 = por %p63, %p64
      %p66 = scmp.ne.s32.totalorder %s57, %s58
      %p67 = scmp.eq.s32.totalorder %s26, 0
      %p68 = por %p66, %p67
      %p69 = scmp.ne.s32.totalorder %s57, %s58
      %p70 = scmp.eq.s32.totalorder %s27, 1
      %p71 = por %p69, %p70
      %p73 = scmp.ne.s32.totalorder %s58, %s72
      %p74 = scmp.eq.s32.totalorder %s27, 0
      %p75 = por %p73, %p74
      %s77 = sadd.s32 %s76, 1
      %p80 = scmp.eq.s32.totalorder %s21, 1
      %p81 = scmp.ne.s32.totalorder %s76, %s78
      %p82 = scmp.eq.s32.totalorder %s21, 0
      %p83 = por %p81, %p82
      %p84 = scmp.ne.s32.totalorder %s76, %s78
      %p85 = scmp.eq.s32.totalorder %s26, 1
      %p86 = por %p84, %p85
      %p87 = scmp.ne.s32.totalorder %s78, %s79
      %p88 = scmp.eq.s32.totalorder %s26, 0
      %p89 = por %p87, %p88
      %p90 = scmp.ne.s32.totalorder %s78, %s79
      %p91 = scmp.eq.s32.totalorder %s27, 1
      %p92 = por %p90, %p91
      %p94 = scmp.ne.s32.totalorder %s79, %s93
      %p95 = scmp.eq.s32.totalorder %s27, 0
      %p96 = por %p94, %p95
      %s98 = sadd.s32 %s97, 1
      %p101 = scmp.eq.s32.totalorder %s21, 1
      %p102 = scmp.ne.s32.totalorder %s97, %s99
      %p103 = scmp.eq.s32.totalorder %s21, 0
      %p104 = por %p102, %p103
      %p105 = scmp.ne.s32.totalorder %s97, %s99
      %p106 = scmp.eq.s32.totalorder %s26, 1
      %p107 = por %p105, %p106
      %p108 = scmp.ne.s32.totalorder %s99, %s100
      %p109 = scmp.eq.s32.totalorder %s26, 0
      %p110 = por %p108, %p109
      %p111 = scmp.ne.s32.totalorder %s99, %s100
      %p112 = scmp.eq.s32.totalorder %s27, 1
      %p113 = por %p111, %p112
      %p115 = scmp.ne.s32.totalorder %s100, %s114
      %p116 = scmp.eq.s32.totalorder %s27, 0
      %p117 = por %p115, %p116
      %s119 = sadd.s32 %s118, 1
      %p122 = scmp.eq.s32.totalorder %s21, 1
      %p123 = scmp.ne.s32.totalorder %s118, %s120
      %p124 = scmp.eq.s32.totalorder %s21, 0
      %p125 = por %p123, %p124
      %p126 = scmp.ne.s32.totalorder %s118, %s120
      %p127 = scmp.eq.s32.totalorder %s26, 1
      %p128 = por %p126, %p127
      %p129 = scmp.ne.s32.totalorder %s120, %s121
      %p130 = scmp.eq.s32.totalorder %s26, 0
      %p131 = por %p129, %p130
      %p132 = scmp.ne.s32.totalorder %s120, %s121
      %p133 = scmp.eq.s32.totalorder %s27, 1
      %p134 = por %p132, %p133
      %p136 = scmp.ne.s32.totalorder %s121, %s135
      %p137 = scmp.eq.s32.totalorder %s27, 0
      %p138 = por %p136, %p137
      %s140 = sadd.s32 %s139, 1
      %p143 = scmp.eq.s32.totalorder %s21, 1
      %p144 = scmp.ne.s32.totalorder %s139, %s141
      %p145 = scmp.eq.s32.totalorder %s21, 0
      %p146 = por %p144, %p145
      %p147 = scmp.ne.s32.totalorder %s139, %s141
      %p148 = scmp.eq.s32.totalorder %s26, 1
      %p149 = por %p147, %p148
      %p150 = scmp.ne.s32.totalorder %s141, %s142
      %p151 = scmp.eq.s32.totalorder %s26, 0
      %p152 = por %p150, %p151
      %p153 = scmp.ne.s32.totalorder %s141, %s142
      %p154 = scmp.eq.s32.totalorder %s27, 1
      %p155 = por %p153, %p154
      %p157 = scmp.ne.s32.totalorder %s142, %s156
      %p158 = scmp.eq.s32.totalorder %s27, 0
      %p159 = por %p157, %p158
      %s161 = sadd.s32 %s160, 1
      %p164 = scmp.eq.s32.totalorder %s21, 1
      %p165 = scmp.ne.s32.totalorder %s160, %s162
      %p166 = scmp.eq.s32.totalorder %s21, 0
      %p167 = por %p165, %p166
      %p168 = scmp.ne.s32.totalorder %s160, %s162
      %p169 = scmp.eq.s32.totalorder %s26, 1
      %p170 = por %p168, %p169
      %p171 = scmp.ne.s32.totalorder %s162, %s163
      %p172 = scmp.eq.s32.totalorder %s26, 0
      %p173 = por %p171, %p172
      %p174 = scmp.ne.s32.totalorder %s162, %s163
      %p175 = scmp.eq.s32.totalorder %s27, 1
      %p176 = por %p174, %p175
      %p178 = scmp.ne.s32.totalorder %s163, %s177
      %p179 = scmp.eq.s32.totalorder %s27, 0
      %p180 = por %p178, %p179
      %s181 = ssub.s32 %s21, %s28
      %p182 = scmp.eq.s32.totalorder %s181, 0
      %s184 = sadd.s32 %s183, 1
      %s185 = scalar_select %p182, %s183, %s184
      %p188 = pneg %p182
      %p189 = scmp.eq.s32.totalorder %s21, 1
      %p190 = por %p188, %p189
      %p191 = scmp.ne.s32.totalorder %s183, %s186
      %p192 = scmp.eq.s32.totalorder %s21, 0
      %p193 = por %p191, %p192
      %p194 = scmp.ne.s32.totalorder %s183, %s186
      %p195 = scmp.eq.s32.totalorder %s26, 1
      %p196 = por %p194, %p195
      %p197 = scmp.ne.s32.totalorder %s186, %s187
      %p198 = scmp.eq.s32.totalorder %s26, 0
      %p199 = por %p197, %p198
      %p200 = scmp.ne.s32.totalorder %s186, %s187
      %p201 = scmp.eq.s32.totalorder %s27, 1
      %p202 = por %p200, %p201
      %p204 = scmp.ne.s32.totalorder %s187, %s203
      %p205 = scmp.eq.s32.totalorder %s27, 0
      %p206 = por %p204, %p205
      %p207 = scmp.le.s32.totalorder 1, %s21
      %p208 = scmp.lt.s32.totalorder %s21, 3
      %p209 = pnand %p207, %p208
      %p210 = pneg %p209
      // Predicated region
      $region9: #{tpu_custom_call.1} parent=5 // pred_check
        _
      $region10: #{tpu_custom_call.1} parent=5 // pred_check_branch
        %212 = sbr.rel (%p209) target = $region12
      $region11: #{tpu_custom_call.1} parent=5 // pred_region
        %s213 = ssub.s32 %s21, 1
        // Predicated region
        $region13: #{tpu_custom_call.1} parent=11 // pred_check
          %p214 = pneg %p68
        $region14: #{tpu_custom_call.1} parent=11 // pred_check_branch
          %216 = sbr.rel (%p214) target = $region16
        $region15: #{tpu_custom_call.1} parent=11 // pred_region
          _
        $region16: #{tpu_custom_call.1} parent=11 // pred_fallthru
          _
        // Predicated region
        $region17: #{tpu_custom_call.1} parent=11 // pred_check
          %p217 = pneg %p89
        $region18: #{tpu_custom_call.1} parent=11 // pred_check_branch
          %219 = sbr.rel (%p217) target = $region20
        $region19: #{tpu_custom_call.1} parent=11 // pred_region
          %s221 = ssub.s32 16, 16
          %222 = vsyncadd [#allocation6], %s221
          %s224 = sshll.u32 [#allocation5], 4
          %s225 = int_to_ptr.vmem [resolvable:$true] %s224
          %227 = dma.hbm_to_vmem [thread:$0]  %s2, 16, %s225, [#allocation6]
        $region20: #{tpu_custom_call.1} parent=11 // pred_fallthru
          _
        // Predicated region
        $region21: #{tpu_custom_call.1} parent=11 // pred_check
          %p228 = pneg %p110
        $region22: #{tpu_custom_call.1} parent=11 // pred_check_branch
          %230 = sbr.rel (%p228) target = $region24
        $region23: #{tpu_custom_call.1} parent=11 // pred_region
          %s232 = ssub.s32 2048, 2048
          %233 = vsyncadd [#allocation6], %s232
          %s234 = sshll.u32 [#allocation7], 4
          %s235 = int_to_ptr.vmem [resolvable:$true] %s234
          %240 = dma.hbm_to_vmem [thread:$0]  %s3, 2048, %s235, [#allocation6], 128, 128, 8
        $region24: #{tpu_custom_call.1} parent=11 // pred_fallthru
          _
        // Predicated region
        $region25: #{tpu_custom_call.1} parent=11 // pred_check
          %p241 = pneg %p131
        $region26: #{tpu_custom_call.1} parent=11 // pred_check_branch
          %243 = sbr.rel (%p241) target = $region28
        $region27: #{tpu_custom_call.1} parent=11 // pred_region
          _
        $region28: #{tpu_custom_call.1} parent=11 // pred_fallthru
          _
        // Predicated region
        $region29: #{tpu_custom_call.1} parent=11 // pred_check
          %p244 = pneg %p152
        $region30: #{tpu_custom_call.1} parent=11 // pred_check_branch
          %246 = sbr.rel (%p244) target = $region32
        $region31: #{tpu_custom_call.1} parent=11 // pred_region
          %s248 = ssub.s32 2048, 2048
          %249 = vsyncadd [#allocation9], %s248
          %s250 = sshll.u32 [#allocation8], 4
          %s251 = int_to_ptr.vmem [resolvable:$true] %s250
          %256 = dma.hbm_to_vmem [thread:$0]  %s5, 2048, %s251, [#allocation9], 64, 64, 4
        $region32: #{tpu_custom_call.1} parent=11 // pred_fallthru
          _
        // Predicated region
        $region33: #{tpu_custom_call.1} parent=11 // pred_check
          %p257 = pneg %p173
        $region34: #{tpu_custom_call.1} parent=11 // pred_check_branch
          %259 = sbr.rel (%p257) target = $region36
        $region35: #{tpu_custom_call.1} parent=11 // pred_region
          _
        $region36: #{tpu_custom_call.1} parent=11 // pred_fallthru
          _
      $region12: #{tpu_custom_call.1} parent=5 // pred_fallthru
        _
      %p260 = scmp.lt.s32.totalorder %s21, 2
      // Predicated region
      $region37: #{tpu_custom_call.1} parent=5 // pred_check
        %p261 = pneg %p260
      $region38: #{tpu_custom_call.1} parent=5 // pred_check_branch
        %263 = sbr.rel (%p261) target = $region40
      $region39: #{tpu_custom_call.1} parent=5 // pred_region
        // Predicated region
        $region41: #{tpu_custom_call.1} parent=39 // pred_check
          %p264 = pneg %p41
        $region42: #{tpu_custom_call.1} parent=39 // pred_check_branch
          %266 = sbr.rel (%p264) target = $region44
        $region43: #{tpu_custom_call.1} parent=39 // pred_region
          %s267 = sand.u32 %s31, 1
          %s268 = scalar_lea.sflag [#allocation3], %s267
          %s269 = sand.u32 %s31, 1
          %s270 = smul.addr %s269, 128
          %s271 = scalar_lea.vmem [#allocation2], %s270
          %s272 = smul.u32 16, %s21
          %s274 = ssub.s32 2048, 2048
          %275 = vsyncadd %s268, %s274
          %s276 = smul.addr %s272, 128
          %s277 = scalar_lea.hbm %s0, %s276
          %s278 = sshll.u32 %s271, 4
          %s279 = int_to_ptr.vmem [resolvable:$true] %s278
          %284 = dma.hbm_to_vmem [thread:$0]  %s277, 2048, %s279, %s268, 128, 128, 8
        $region44: #{tpu_custom_call.1} parent=39 // pred_fallthru
          _
      $region40: #{tpu_custom_call.1} parent=5 // pred_fallthru
        _
      %p285 = scmp.le.s32.totalorder 1, %s21
      %p286 = scmp.lt.s32.totalorder %s21, 3
      %p287 = pnand %p285, %p286
      %p288 = pneg %p287
      // Predicated region
      $region45: #{tpu_custom_call.1} parent=5 // pred_check
        _
      $region46: #{tpu_custom_call.1} parent=5 // pred_check_branch
        %290 = sbr.rel (%p287) target = $region48
      $region47: #{tpu_custom_call.1} parent=5 // pred_region
        %s291 = ssub.s32 %s21, 1
        %s292 = sand.u32 %s34, 1
        %s293 = scalar_lea.sflag [#allocation3], %s292
        %s294 = sand.u32 %s34, 1
        %s295 = smul.addr %s294, 128
        %s296 = scalar_lea.vmem [#allocation2], %s295
        // Predicated region
        $region49: #{tpu_custom_call.1} parent=47 // pred_check
          %p297 = pneg %p47
        $region50: #{tpu_custom_call.1} parent=47 // pred_check_branch
          %299 = sbr.rel (%p297) target = $region52
        $region51: #{tpu_custom_call.1} parent=47 // pred_region
          %300 = dma.done %s293, 2048
        $region52: #{tpu_custom_call.1} parent=47 // pred_fallthru
          _
        // Predicated region
        $region53: #{tpu_custom_call.1} parent=47 // pred_check
          %p301 = pneg %p89
        $region54: #{tpu_custom_call.1} parent=47 // pred_check_branch
          %303 = sbr.rel (%p301) target = $region56
        $region55: #{tpu_custom_call.1} parent=47 // pred_region
          %304 = dma.done [#allocation6], 16
        $region56: #{tpu_custom_call.1} parent=47 // pred_fallthru
          _
        // Predicated region
        $region57: #{tpu_custom_call.1} parent=47 // pred_check
          %p305 = pneg %p110
        $region58: #{tpu_custom_call.1} parent=47 // pred_check_branch
          %307 = sbr.rel (%p305) target = $region60
        $region59: #{tpu_custom_call.1} parent=47 // pred_region
          %308 = dma.done [#allocation6], 2048
        $region60: #{tpu_custom_call.1} parent=47 // pred_fallthru
          _
        // Predicated region
        $region61: #{tpu_custom_call.1} parent=47 // pred_check
          %p309 = pneg %p152
        $region62: #{tpu_custom_call.1} parent=47 // pred_check_branch
          %311 = sbr.rel (%p309) target = $region64
        $region63: #{tpu_custom_call.1} parent=47 // pred_region
          %312 = dma.done [#allocation9], 2048
        $region64: #{tpu_custom_call.1} parent=47 // pred_fallthru
          _
        %s313 = sand.u32 %s34, 1
        %s314 = scalar_lea.sflag [#allocation3], %s313
        %s315 = sand.u32 %s34, 1
        %s316 = smul.addr %s315, 128
        %s317 = scalar_lea.vmem [#allocation2], %s316
        %p318 = pneg %p47
        %p319 = pneg %p44
        %p320 = pneg %p68
        %p321 = pneg %p65
        %p322 = pneg %p89
        %p323 = pneg %p86
        %p324 = pneg %p110
        %p325 = pneg %p107
        %p326 = pneg %p131
        %p327 = pneg %p128
        %p328 = pneg %p152
        %p329 = pneg %p149
        %p330 = pneg %p173
        %p331 = pneg %p170
        %p332 = pneg %p199
        %p333 = pneg %p196
        %s334 = sand.u32 %s186, 1
        %s335 = scalar_lea.sflag [#allocation4], %s334
        %s336 = sand.u32 %s186, 1
        %s337 = smul.addr %s336, 128
        %s338 = scalar_lea.vmem [#allocation10], %s337
        %s339 = smul.u32 16, %s26
        %s340 = smul.u32 16, %s26
        %v342 = vld [vmem:[%s296] sm:$0xff]
        %v343 = vld [vmem:[%s296 + $0x8] sm:$0xff]
        %v344 = vld [vmem:[%s296 + $0x10] sm:$0xff]
        %v345 = vld [vmem:[%s296 + $0x18] sm:$0xff]
        %v346 = vld [vmem:[%s296 + $0x20] sm:$0xff]
        %v347 = vld [vmem:[%s296 + $0x28] sm:$0xff]
        %v348 = vld [vmem:[%s296 + $0x30] sm:$0xff]
        %v349 = vld [vmem:[%s296 + $0x38] sm:$0xff]
        %v350 = vld [vmem:[%s296 + $0x40] sm:$0xff]
        %v351 = vld [vmem:[%s296 + $0x48] sm:$0xff]
        %v352 = vld [vmem:[%s296 + $0x50] sm:$0xff]
        %v353 = vld [vmem:[%s296 + $0x58] sm:$0xff]
        %v354 = vld [vmem:[%s296 + $0x60] sm:$0xff]
        %v355 = vld [vmem:[%s296 + $0x68] sm:$0xff]
        %v356 = vld [vmem:[%s296 + $0x70] sm:$0xff]
        %v357 = vld [vmem:[%s296 + $0x78] sm:$0xff]
        %358 = vadd.xlane.f32.xlu0 %v342
        %v359 = vpop.xlane.xlu0 %358
        %360 = vadd.xlane.f32.xlu0 %v343
        %v361 = vpop.xlane.xlu0 %360
        %362 = vadd.xlane.f32.xlu0 %v344
        %v363 = vpop.xlane.xlu0 %362
        %364 = vadd.xlane.f32.xlu0 %v345
        %v365 = vpop.xlane.xlu0 %364
        %366 = vadd.xlane.f32.xlu0 %v346
        %v367 = vpop.xlane.xlu0 %366
        %368 = vadd.xlane.f32.xlu0 %v347
        %v369 = vpop.xlane.xlu0 %368
        %370 = vadd.xlane.f32.xlu0 %v348
        %v371 = vpop.xlane.xlu0 %370
        %372 = vadd.xlane.f32.xlu0 %v349
        %v373 = vpop.xlane.xlu0 %372
        %374 = vadd.xlane.f32.xlu0 %v350
        %v375 = vpop.xlane.xlu0 %374
        %376 = vadd.xlane.f32.xlu0 %v351
        %v377 = vpop.xlane.xlu0 %376
        %378 = vadd.xlane.f32.xlu0 %v352
        %v379 = vpop.xlane.xlu0 %378
        %380 = vadd.xlane.f32.xlu0 %v353
        %v381 = vpop.xlane.xlu0 %380
        %382 = vadd.xlane.f32.xlu0 %v354
        %v383 = vpop.xlane.xlu0 %382
        %384 = vadd.xlane.f32.xlu0 %v355
        %v385 = vpop.xlane.xlu0 %384
        %386 = vadd.xlane.f32.xlu0 %v356
        %v387 = vpop.xlane.xlu0 %386
        %388 = vadd.xlane.f32.xlu0 %v357
        %v389 = vpop.xlane.xlu0 %388
        %v390 = vrcp.pop 128.0
        %v391 = vmul.f32 %v359, %v390
        %v392 = vmul.f32 %v361, %v390
        %v393 = vmul.f32 %v363, %v390
        %v394 = vmul.f32 %v365, %v390
        %v395 = vmul.f32 %v367, %v390
        %v396 = vmul.f32 %v369, %v390
        %v397 = vmul.f32 %v371, %v390
        %v398 = vmul.f32 %v373, %v390
        %v399 = vmul.f32 %v375, %v390
        %v400 = vmul.f32 %v377, %v390
        %v401 = vmul.f32 %v379, %v390
        %v402 = vmul.f32 %v381, %v390
        %v403 = vmul.f32 %v383, %v390
        %v404 = vmul.f32 %v385, %v390
        %v405 = vmul.f32 %v387, %v390
        %v406 = vmul.f32 %v389, %v390
        %v407 = vsub.f32 %v342, %v391
        %v408 = vsub.f32 %v343, %v392
        %v409 = vsub.f32 %v344, %v393
        %v410 = vsub.f32 %v345, %v394
        %v411 = vsub.f32 %v346, %v395
        %v412 = vsub.f32 %v347, %v396
        %v413 = vsub.f32 %v348, %v397
        %v414 = vsub.f32 %v349, %v398
        %v415 = vsub.f32 %v350, %v399
        %v416 = vsub.f32 %v351, %v400
        %v417 = vsub.f32 %v352, %v401
        %v418 = vsub.f32 %v353, %v402
        %v419 = vsub.f32 %v354, %v403
        %v420 = vsub.f32 %v355, %v404
        %v421 = vsub.f32 %v356, %v405
        %v422 = vsub.f32 %v357, %v406
        %v423 = vmul.f32 %v407, %v407
        %v424 = vmul.f32 %v408, %v408
        %v425 = vmul.f32 %v409, %v409
        %v426 = vmul.f32 %v410, %v410
        %v427 = vmul.f32 %v411, %v411
        %v428 = vmul.f32 %v412, %v412
        %v429 = vmul.f32 %v413, %v413
        %v430 = vmul.f32 %v414, %v414
        %v431 = vmul.f32 %v415, %v415
        %v432 = vmul.f32 %v416, %v416
        %v433 = vmul.f32 %v417, %v417
        %v434 = vmul.f32 %v418, %v418
        %v435 = vmul.f32 %v419, %v419
        %v436 = vmul.f32 %v420, %v420
        %v437 = vmul.f32 %v421, %v421
        %v438 = vmul.f32 %v422, %v422
        %439 = vadd.xlane.f32.xlu0 %v423
        %v440 = vpop.xlane.xlu0 %439
        %441 = vadd.xlane.f32.xlu0 %v424
        %v442 = vpop.xlane.xlu0 %441
        %443 = vadd.xlane.f32.xlu0 %v425
        %v444 = vpop.xlane.xlu0 %443
        %445 = vadd.xlane.f32.xlu0 %v426
        %v446 = vpop.xlane.xlu0 %445
        %447 = vadd.xlane.f32.xlu0 %v427
        %v448 = vpop.xlane.xlu0 %447
        %449 = vadd.xlane.f32.xlu0 %v428
        %v450 = vpop.xlane.xlu0 %449
        %451 = vadd.xlane.f32.xlu0 %v429
        %v452 = vpop.xlane.xlu0 %451
        %453 = vadd.xlane.f32.xlu0 %v430
        %v454 = vpop.xlane.xlu0 %453
        %455 = vadd.xlane.f32.xlu0 %v431
        %v456 = vpop.xlane.xlu0 %455
        %457 = vadd.xlane.f32.xlu0 %v432
        %v458 = vpop.xlane.xlu0 %457
        %459 = vadd.xlane.f32.xlu0 %v433
        %v460 = vpop.xlane.xlu0 %459
        %461 = vadd.xlane.f32.xlu0 %v434
        %v462 = vpop.xlane.xlu0 %461
        %463 = vadd.xlane.f32.xlu0 %v435
        %v464 = vpop.xlane.xlu0 %463
        %465 = vadd.xlane.f32.xlu0 %v436
        %v466 = vpop.xlane.xlu0 %465
        %467 = vadd.xlane.f32.xlu0 %v437
        %v468 = vpop.xlane.xlu0 %467
        %469 = vadd.xlane.f32.xlu0 %v438
        %v470 = vpop.xlane.xlu0 %469
        %v471 = vmul.f32 %v440, %v390
        %v472 = vmul.f32 %v442, %v390
        %v473 = vmul.f32 %v444, %v390
        %v474 = vmul.f32 %v446, %v390
        %v475 = vmul.f32 %v448, %v390
        %v476 = vmul.f32 %v450, %v390
        %v477 = vmul.f32 %v452, %v390
        %v478 = vmul.f32 %v454, %v390
        %v479 = vmul.f32 %v456, %v390
        %v480 = vmul.f32 %v458, %v390
        %v481 = vmul.f32 %v460, %v390
        %v482 = vmul.f32 %v462, %v390
        %v483 = vmul.f32 %v464, %v390
        %v484 = vmul.f32 %v466, %v390
        %v485 = vmul.f32 %v468, %v390
        %v486 = vmul.f32 %v470, %v390
        %v487 = vadd.f32 %v471, 1e-05
        %v488 = vadd.f32 %v472, 1e-05
        %v489 = vadd.f32 %v473, 1e-05
        %v490 = vadd.f32 %v474, 1e-05
        %v491 = vadd.f32 %v475, 1e-05
        %v492 = vadd.f32 %v476, 1e-05
        %v493 = vadd.f32 %v477, 1e-05
        %v494 = vadd.f32 %v478, 1e-05
        %v495 = vadd.f32 %v479, 1e-05
        %v496 = vadd.f32 %v480, 1e-05
        %v497 = vadd.f32 %v481, 1e-05
        %v498 = vadd.f32 %v482, 1e-05
        %v499 = vadd.f32 %v483, 1e-05
        %v500 = vadd.f32 %v484, 1e-05
        %v501 = vadd.f32 %v485, 1e-05
        %v502 = vadd.f32 %v486, 1e-05
        %v503 = vrsqrt.pop %v487
        %v504 = vrsqrt.pop %v488
        %v505 = vrsqrt.pop %v489
        %v506 = vrsqrt.pop %v490
        %v507 = vrsqrt.pop %v491
        %v508 = vrsqrt.pop %v492
        %v509 = vrsqrt.pop %v493
        %v510 = vrsqrt.pop %v494
        %v511 = vrsqrt.pop %v495
        %v512 = vrsqrt.pop %v496
        %v513 = vrsqrt.pop %v497
        %v514 = vrsqrt.pop %v498
        %v515 = vrsqrt.pop %v499
        %v516 = vrsqrt.pop %v500
        %v517 = vrsqrt.pop %v501
        %v518 = vrsqrt.pop %v502
        %v519 = vmul.f32 %v407, %v503
        %v520 = vmul.f32 %v408, %v504
        %v521 = vmul.f32 %v409, %v505
        %v522 = vmul.f32 %v410, %v506
        %v523 = vmul.f32 %v411, %v507
        %v524 = vmul.f32 %v412, %v508
        %v525 = vmul.f32 %v413, %v509
        %v526 = vmul.f32 %v414, %v510
        %v527 = vmul.f32 %v415, %v511
        %v528 = vmul.f32 %v416, %v512
        %v529 = vmul.f32 %v417, %v513
        %v530 = vmul.f32 %v418, %v514
        %v531 = vmul.f32 %v419, %v515
        %v532 = vmul.f32 %v420, %v516
        %v533 = vmul.f32 %v421, %v517
        %v534 = vmul.f32 %v422, %v518
        %v535 = vld [vmem:[%s1] sm:$0x1]
        %v537 = vlaneseq
        %v538 = vshrl.u32 %v537, 7
        %v539 = vsub.s32 0, %v538
        %v540 = vrot.slane %v535, %v539
        %v542 = vmul.f32 %v519, %v540
        %v543 = vmul.f32 %v520, %v540
        %v544 = vmul.f32 %v521, %v540
        %v545 = vmul.f32 %v522, %v540
        %v546 = vmul.f32 %v523, %v540
        %v547 = vmul.f32 %v524, %v540
        %v548 = vmul.f32 %v525, %v540
        %v549 = vmul.f32 %v526, %v540
        %v550 = vmul.f32 %v527, %v540
        %v551 = vmul.f32 %v528, %v540
        %v552 = vmul.f32 %v529, %v540
        %v553 = vmul.f32 %v530, %v540
        %v554 = vmul.f32 %v531, %v540
        %v555 = vmul.f32 %v532, %v540
        %v556 = vmul.f32 %v533, %v540
        %v557 = vmul.f32 %v534, %v540
        %v558 = vld [vmem:[#allocation5] sm:$0x1]
        %v560 = vlaneseq
        %v561 = vshrl.u32 %v560, 7
        %v562 = vsub.s32 0, %v561
        %v563 = vrot.slane %v558, %v562
        %v565 = vadd.f32 %v542, %v563
        %v566 = vadd.f32 %v543, %v563
        %v567 = vadd.f32 %v544, %v563
        %v568 = vadd.f32 %v545, %v563
        %v569 = vadd.f32 %v546, %v563
        %v570 = vadd.f32 %v547, %v563
        %v571 = vadd.f32 %v548, %v563
        %v572 = vadd.f32 %v549, %v563
        %v573 = vadd.f32 %v550, %v563
        %v574 = vadd.f32 %v551, %v563
        %v575 = vadd.f32 %v552, %v563
        %v576 = vadd.f32 %v553, %v563
        %v577 = vadd.f32 %v554, %v563
        %v578 = vadd.f32 %v555, %v563
        %v579 = vadd.f32 %v556, %v563
        %v580 = vadd.f32 %v557, %v563
        %v581 = vpack.c.bf16 %v566, %v565
        %v582 = vpack.c.bf16 %v568, %v567
        %v583 = vpack.c.bf16 %v570, %v569
        %v584 = vpack.c.bf16 %v572, %v571
        %v585 = vpack.c.bf16 %v574, %v573
        %v586 = vpack.c.bf16 %v576, %v575
        %v587 = vpack.c.bf16 %v578, %v577
        %v588 = vpack.c.bf16 %v580, %v579
        %v589 = vld [vmem:[#allocation7] sm:$0xff]
        %v590 = vld [vmem:[#allocation7 + $0x8] sm:$0xff]
        %v591 = vld [vmem:[#allocation7 + $0x10] sm:$0xff]
        %v592 = vld [vmem:[#allocation7 + $0x18] sm:$0xff]
        %v593 = vld [vmem:[#allocation7 + $0x20] sm:$0xff]
        %v594 = vld [vmem:[#allocation7 + $0x28] sm:$0xff]
        %v595 = vld [vmem:[#allocation7 + $0x30] sm:$0xff]
        %v596 = vld [vmem:[#allocation7 + $0x38] sm:$0xff]
        %v597 = vld [vmem:[#allocation7 + $0x40] sm:$0xff]
        %v598 = vld [vmem:[#allocation7 + $0x48] sm:$0xff]
        %v599 = vld [vmem:[#allocation7 + $0x50] sm:$0xff]
        %v600 = vld [vmem:[#allocation7 + $0x58] sm:$0xff]
        %v601 = vld [vmem:[#allocation7 + $0x60] sm:$0xff]
        %v602 = vld [vmem:[#allocation7 + $0x68] sm:$0xff]
        %v603 = vld [vmem:[#allocation7 + $0x70] sm:$0xff]
        %v604 = vld [vmem:[#allocation7 + $0x78] sm:$0xff]
        %v605 = vld [vmem:[%s4] sm:$0x3]
        %v607 = vlaneseq
        %v608 = vshrl.u32 %v607, 7
        %v609 = vsub.s32 0, %v608
        %v610 = vrot.slane %v605, %v609
        %v611 = vlaneseq
        %v612 = vshrl.u32 %v611, 7
        %v613 = vsub.s32 1, %v612
        %v614 = vrot.slane %v605, %v613
        %v633 = vunpack.c.l.b16 %v589
        %v634 = vunpack.c.h.b16 %v589
        %v635 = vunpack.c.l.b16 %v590
        %v636 = vunpack.c.h.b16 %v590
        %v637 = vunpack.c.l.b16 %v591
        %v638 = vunpack.c.h.b16 %v591
        %v639 = vunpack.c.l.b16 %v592
        %v640 = vunpack.c.h.b16 %v592
        %v641 = vunpack.c.l.b16 %v593
        %v642 = vunpack.c.h.b16 %v593
        %v643 = vunpack.c.l.b16 %v594
        %v644 = vunpack.c.h.b16 %v594
        %v645 = vunpack.c.l.b16 %v595
        %v646 = vunpack.c.h.b16 %v595
        %v647 = vunpack.c.l.b16 %v596
        %v648 = vunpack.c.h.b16 %v596
        %v649 = vunpack.c.l.b16 %v597
        %v650 = vunpack.c.h.b16 %v597
        %v651 = vunpack.c.l.b16 %v598
        %v652 = vunpack.c.h.b16 %v598
        %v653 = vunpack.c.l.b16 %v599
        %v654 = vunpack.c.h.b16 %v599
        %v655 = vunpack.c.l.b16 %v600
        %v656 = vunpack.c.h.b16 %v600
        %v657 = vunpack.c.l.b16 %v601
        %v658 = vunpack.c.h.b16 %v601
        %v659 = vunpack.c.l.b16 %v602
        %v660 = vunpack.c.h.b16 %v602
        %v661 = vunpack.c.l.b16 %v603
        %v662 = vunpack.c.h.b16 %v603
        %v663 = vunpack.c.l.b16 %v604
        %v664 = vunpack.c.h.b16 %v604
        %v665 = vpack.c.b16 %v635, %v633
        %v666 = vpack.c.b16 %v636, %v634
        %v667 = vpack.c.b16 %v639, %v637
        %v668 = vpack.c.b16 %v640, %v638
        %v669 = vpack.c.b16 %v643, %v641
        %v670 = vpack.c.b16 %v644, %v642
        %v671 = vpack.c.b16 %v647, %v645
        %v672 = vpack.c.b16 %v648, %v646
        %v673 = vpack.c.b16 %v651, %v649
        %v674 = vpack.c.b16 %v652, %v650
        %v675 = vpack.c.b16 %v655, %v653
        %v676 = vpack.c.b16 %v656, %v654
        %v677 = vpack.c.b16 %v659, %v657
        %v678 = vpack.c.b16 %v660, %v658
        %v679 = vpack.c.b16 %v663, %v661
        %v680 = vpack.c.b16 %v664, %v662
        %697 = vmatprep.subr.bf16.mxu0 %v680
        %698 = vmatpush1.bf16.msra.mxu0 %v679
        %699 = vmatprep.subr.bf16.mxu0 %v678
        %700 = vmatpush1.bf16.msra.mxu0 %v677
        %701 = vmatprep.subr.bf16.mxu0 %v676
        %702 = vmatpush1.bf16.msra.mxu0 %v675
        %703 = vmatprep.subr.bf16.mxu0 %v674
        %704 = vmatpush1.bf16.msra.mxu0 %v673
        %705 = vmatprep.subr.bf16.mxu0 %v672
        %706 = vmatpush1.bf16.msra.mxu0 %v671
        %707 = vmatprep.subr.bf16.mxu0 %v670
        %708 = vmatpush1.bf16.msra.mxu0 %v669
        %709 = vmatprep.subr.bf16.mxu0 %v668
        %710 = vmatpush1.bf16.msra.mxu0 %v667
        %711 = vmatprep.subr.bf16.mxu0 %v666
        %712 = vmatpush1.bf16.msra.mxu0 %v665
        %713 = vmatprep.subr.bf16.mxu0 0
        %714 = vmatpush2.bf16.msra.mxu0 0
        %715 = vmatprep.subr.bf16.mxu0 0
        %716 = vmatpush2.bf16.msra.mxu0 0
        %717 = vmatprep.subr.bf16.mxu0 0
        %718 = vmatpush2.bf16.msra.mxu0 0
        %719 = vmatprep.subr.bf16.mxu0 0
        %720 = vmatpush2.bf16.msra.mxu0 0
        %721 = vmatprep.subr.bf16.mxu0 0
        %722 = vmatpush2.bf16.msra.mxu0 0
        %723 = vmatprep.subr.bf16.mxu0 0
        %724 = vmatpush2.bf16.msra.mxu0 0
        %725 = vmatprep.subr.bf16.mxu0 0
        %726 = vmatpush2.bf16.msra.mxu0 0
        %727 = vmatprep.subr.bf16.mxu0 0
        %728 = vmatpush2.bf16.msra.mxu0 0
        %729 = vmatprep.mubr.bf16.mxu0 0
        %730 = vmatmul.mubr.bf16.gmra.mxu0 %v581
        %v731 = vpop.f32.mrf.mxu0
        %v732 = vadd.f32 %v610, %v731
        %v733 = vpop.f32.mrf.mxu0
        %v734 = vadd.f32 %v614, %v733
        %v735 = vpop.f32.mrf.mxu0
        %v736 = vadd.f32 %v610, %v735
        %v737 = vpop.f32.mrf.mxu0
        %v738 = vadd.f32 %v614, %v737
        %739 = vmatprep.mubr.bf16.mxu0 0
        %740 = vmatmul.mubr.bf16.gmra.mxu0 %v582
        %v741 = vpop.f32.mrf.mxu0
        %v742 = vadd.f32 %v610, %v741
        %v743 = vpop.f32.mrf.mxu0
        %v744 = vadd.f32 %v614, %v743
        %v745 = vpop.f32.mrf.mxu0
        %v746 = vadd.f32 %v610, %v745
        %v747 = vpop.f32.mrf.mxu0
        %v748 = vadd.f32 %v614, %v747
        %749 = vmatprep.mubr.bf16.mxu0 0
        %750 = vmatmul.mubr.bf16.gmra.mxu0 %v583
        %v751 = vpop.f32.mrf.mxu0
        %v752 = vadd.f32 %v610, %v751
        %v753 = vpop.f32.mrf.mxu0
        %v754 = vadd.f32 %v614, %v753
        %v755 = vpop.f32.mrf.mxu0
        %v756 = vadd.f32 %v610, %v755
        %v757 = vpop.f32.mrf.mxu0
        %v758 = vadd.f32 %v614, %v757
        %759 = vmatprep.mubr.bf16.mxu0 0
        %760 = vmatmul.mubr.bf16.gmra.mxu0 %v584
        %v761 = vpop.f32.mrf.mxu0
        %v762 = vadd.f32 %v610, %v761
        %v763 = vpop.f32.mrf.mxu0
        %v764 = vadd.f32 %v614, %v763
        %v765 = vpop.f32.mrf.mxu0
        %v766 = vadd.f32 %v610, %v765
        %v767 = vpop.f32.mrf.mxu0
        %v768 = vadd.f32 %v614, %v767
        %769 = vmatprep.mubr.bf16.mxu0 0
        %770 = vmatmul.mubr.bf16.gmra.mxu0 %v585
        %v771 = vpop.f32.mrf.mxu0
        %v772 = vadd.f32 %v610, %v771
        %v773 = vpop.f32.mrf.mxu0
        %v774 = vadd.f32 %v614, %v773
        %v775 = vpop.f32.mrf.mxu0
        %v776 = vadd.f32 %v610, %v775
        %v777 = vpop.f32.mrf.mxu0
        %v778 = vadd.f32 %v614, %v777
        %779 = vmatprep.mubr.bf16.mxu0 0
        %780 = vmatmul.mubr.bf16.gmra.mxu0 %v586
        %v781 = vpop.f32.mrf.mxu0
        %v782 = vadd.f32 %v610, %v781
        %v783 = vpop.f32.mrf.mxu0
        %v784 = vadd.f32 %v614, %v783
        %v785 = vpop.f32.mrf.mxu0
        %v786 = vadd.f32 %v610, %v785
        %v787 = vpop.f32.mrf.mxu0
        %v788 = vadd.f32 %v614, %v787
        %789 = vmatprep.mubr.bf16.mxu0 0
        %790 = vmatmul.mubr.bf16.gmra.mxu0 %v587
        %v791 = vpop.f32.mrf.mxu0
        %v792 = vadd.f32 %v610, %v791
        %v793 = vpop.f32.mrf.mxu0
        %v794 = vadd.f32 %v614, %v793
        %v795 = vpop.f32.mrf.mxu0
        %v796 = vadd.f32 %v610, %v795
        %v797 = vpop.f32.mrf.mxu0
        %v798 = vadd.f32 %v614, %v797
        %799 = vmatprep.mubr.bf16.mxu0 0
        %800 = vmatmul.mubr.bf16.gmra.mxu0 %v588
        %v801 = vpop.f32.mrf.mxu0
        %v802 = vadd.f32 %v610, %v801
        %v803 = vpop.f32.mrf.mxu0
        %v804 = vadd.f32 %v614, %v803
        %v805 = vpop.f32.mrf.mxu0
        %v806 = vadd.f32 %v610, %v805
        %v807 = vpop.f32.mrf.mxu0
        %v808 = vadd.f32 %v614, %v807
        %809 = vdwg.mxu0
        %v810 = vmul.f32 %v732, 0.5
        %v811 = vmul.f32 %v734, 0.5
        %v812 = vmul.f32 %v736, 0.5
        %v813 = vmul.f32 %v738, 0.5
        %v814 = vmul.f32 %v742, 0.5
        %v815 = vmul.f32 %v744, 0.5
        %v816 = vmul.f32 %v746, 0.5
        %v817 = vmul.f32 %v748, 0.5
        %v818 = vmul.f32 %v752, 0.5
        %v819 = vmul.f32 %v754, 0.5
        %v820 = vmul.f32 %v756, 0.5
        %v821 = vmul.f32 %v758, 0.5
        %v822 = vmul.f32 %v762, 0.5
        %v823 = vmul.f32 %v764, 0.5
        %v824 = vmul.f32 %v766, 0.5
        %v825 = vmul.f32 %v768, 0.5
        %v826 = vmul.f32 %v772, 0.5
        %v827 = vmul.f32 %v774, 0.5
        %v828 = vmul.f32 %v776, 0.5
        %v829 = vmul.f32 %v778, 0.5
        %v830 = vmul.f32 %v782, 0.5
        %v831 = vmul.f32 %v784, 0.5
        %v832 = vmul.f32 %v786, 0.5
        %v833 = vmul.f32 %v788, 0.5
        %v834 = vmul.f32 %v792, 0.5
        %v835 = vmul.f32 %v794, 0.5
        %v836 = vmul.f32 %v796, 0.5
        %v837 = vmul.f32 %v798, 0.5
        %v838 = vmul.f32 %v802, 0.5
        %v839 = vmul.f32 %v804, 0.5
        %v840 = vmul.f32 %v806, 0.5
        %v841 = vmul.f32 %v808, 0.5
        %v842 = vmul.f32 %v732, 0.70710677
        %v843 = vmul.f32 %v734, 0.70710677
        %v844 = vmul.f32 %v736, 0.70710677
        %v845 = vmul.f32 %v738, 0.70710677
        %v846 = vmul.f32 %v742, 0.70710677
        %v847 = vmul.f32 %v744, 0.70710677
        %v848 = vmul.f32 %v746, 0.70710677
        %v849 = vmul.f32 %v748, 0.70710677
        %v850 = vmul.f32 %v752, 0.70710677
        %v851 = vmul.f32 %v754, 0.70710677
        %v852 = vmul.f32 %v756, 0.70710677
        %v853 = vmul.f32 %v758, 0.70710677
        %v854 = vmul.f32 %v762, 0.70710677
        %v855 = vmul.f32 %v764, 0.70710677
        %v856 = vmul.f32 %v766, 0.70710677
        %v857 = vmul.f32 %v768, 0.70710677
        %v858 = vmul.f32 %v772, 0.70710677
        %v859 = vmul.f32 %v774, 0.70710677
        %v860 = vmul.f32 %v776, 0.70710677
        %v861 = vmul.f32 %v778, 0.70710677
        %v862 = vmul.f32 %v782, 0.70710677
        %v863 = vmul.f32 %v784, 0.70710677
        %v864 = vmul.f32 %v786, 0.70710677
        %v865 = vmul.f32 %v788, 0.70710677
        %v866 = vmul.f32 %v792, 0.70710677
        %v867 = vmul.f32 %v794, 0.70710677
        %v868 = vmul.f32 %v796, 0.70710677
        %v869 = vmul.f32 %v798, 0.70710677
        %v870 = vmul.f32 %v802, 0.70710677
        %v871 = vmul.f32 %v804, 0.70710677
        %v872 = vmul.f32 %v806, 0.70710677
        %v873 = vmul.f32 %v808, 0.70710677
        %v874 = verf.f32.pop %v842
        %v875 = verf.f32.pop %v843
        %v876 = verf.f32.pop %v844
        %v877 = verf.f32.pop %v845
        %v878 = verf.f32.pop %v846
        %v879 = verf.f32.pop %v847
        %v880 = verf.f32.pop %v848
        %v881 = verf.f32.pop %v849
        %v882 = verf.f32.pop %v850
        %v883 = verf.f32.pop %v851
        %v884 = verf.f32.pop %v852
        %v885 = verf.f32.pop %v853
        %v886 = verf.f32.pop %v854
        %v887 = verf.f32.pop %v855
        %v888 = verf.f32.pop %v856
        %v889 = verf.f32.pop %v857
        %v890 = verf.f32.pop %v858
        %v891 = verf.f32.pop %v859
        %v892 = verf.f32.pop %v860
        %v893 = verf.f32.pop %v861
        %v894 = verf.f32.pop %v862
        %v895 = verf.f32.pop %v863
        %v896 = verf.f32.pop %v864
        %v897 = verf.f32.pop %v865
        %v898 = verf.f32.pop %v866
        %v899 = verf.f32.pop %v867
        %v900 = verf.f32.pop %v868
        %v901 = verf.f32.pop %v869
        %v902 = verf.f32.pop %v870
        %v903 = verf.f32.pop %v871
        %v904 = verf.f32.pop %v872
        %v905 = verf.f32.pop %v873
        %v906 = vadd.f32 %v874, 1.0
        %v907 = vadd.f32 %v875, 1.0
        %v908 = vadd.f32 %v876, 1.0
        %v909 = vadd.f32 %v877, 1.0
        %v910 = vadd.f32 %v878, 1.0
        %v911 = vadd.f32 %v879, 1.0
        %v912 = vadd.f32 %v880, 1.0
        %v913 = vadd.f32 %v881, 1.0
        %v914 = vadd.f32 %v882, 1.0
        %v915 = vadd.f32 %v883, 1.0
        %v916 = vadd.f32 %v884, 1.0
        %v917 = vadd.f32 %v885, 1.0
        %v918 = vadd.f32 %v886, 1.0
        %v919 = vadd.f32 %v887, 1.0
        %v920 = vadd.f32 %v888, 1.0
        %v921 = vadd.f32 %v889, 1.0
        %v922 = vadd.f32 %v890, 1.0
        %v923 = vadd.f32 %v891, 1.0
        %v924 = vadd.f32 %v892, 1.0
        %v925 = vadd.f32 %v893, 1.0
        %v926 = vadd.f32 %v894, 1.0
        %v927 = vadd.f32 %v895, 1.0
        %v928 = vadd.f32 %v896, 1.0
        %v929 = vadd.f32 %v897, 1.0
        %v930 = vadd.f32 %v898, 1.0
        %v931 = vadd.f32 %v899, 1.0
        %v932 = vadd.f32 %v900, 1.0
        %v933 = vadd.f32 %v901, 1.0
        %v934 = vadd.f32 %v902, 1.0
        %v935 = vadd.f32 %v903, 1.0
        %v936 = vadd.f32 %v904, 1.0
        %v937 = vadd.f32 %v905, 1.0
        %v938 = vmul.f32 %v810, %v906
        %v939 = vmul.f32 %v811, %v907
        %v940 = vmul.f32 %v812, %v908
        %v941 = vmul.f32 %v813, %v909
        %v942 = vmul.f32 %v814, %v910
        %v943 = vmul.f32 %v815, %v911
        %v944 = vmul.f32 %v816, %v912
        %v945 = vmul.f32 %v817, %v913
        %v946 = vmul.f32 %v818, %v914
        %v947 = vmul.f32 %v819, %v915
        %v948 = vmul.f32 %v820, %v916
        %v949 = vmul.f32 %v821, %v917
        %v950 = vmul.f32 %v822, %v918
        %v951 = vmul.f32 %v823, %v919
        %v952 = vmul.f32 %v824, %v920
        %v953 = vmul.f32 %v825, %v921
        %v954 = vmul.f32 %v826, %v922
        %v955 = vmul.f32 %v827, %v923
        %v956 = vmul.f32 %v828, %v924
        %v957 = vmul.f32 %v829, %v925
        %v958 = vmul.f32 %v830, %v926
        %v959 = vmul.f32 %v831, %v927
        %v960 = vmul.f32 %v832, %v928
        %v961 = vmul.f32 %v833, %v929
        %v962 = vmul.f32 %v834, %v930
        %v963 = vmul.f32 %v835, %v931
        %v964 = vmul.f32 %v836, %v932
        %v965 = vmul.f32 %v837, %v933
        %v966 = vmul.f32 %v838, %v934
        %v967 = vmul.f32 %v839, %v935
        %v968 = vmul.f32 %v840, %v936
        %v969 = vmul.f32 %v841, %v937
        %v970 = vpack.c.bf16 %v940, %v938
        %v971 = vpack.c.bf16 %v941, %v939
        %v972 = vpack.c.bf16 %v944, %v942
        %v973 = vpack.c.bf16 %v945, %v943
        %v974 = vpack.c.bf16 %v948, %v946
        %v975 = vpack.c.bf16 %v949, %v947
        %v976 = vpack.c.bf16 %v952, %v950
        %v977 = vpack.c.bf16 %v953, %v951
        %v978 = vpack.c.bf16 %v956, %v954
        %v979 = vpack.c.bf16 %v957, %v955
        %v980 = vpack.c.bf16 %v960, %v958
        %v981 = vpack.c.bf16 %v961, %v959
        %v982 = vpack.c.bf16 %v964, %v962
        %v983 = vpack.c.bf16 %v965, %v963
        %v984 = vpack.c.bf16 %v968, %v966
        %v985 = vpack.c.bf16 %v969, %v967
        %v986 = vld [vmem:[#allocation8] sm:$0xf]
        %v987 = vld [vmem:[#allocation8 + $0x4] sm:$0xf]
        %v988 = vld [vmem:[#allocation8 + $0x8] sm:$0xf]
        %v989 = vld [vmem:[#allocation8 + $0xc] sm:$0xf]
        %v990 = vld [vmem:[#allocation8 + $0x10] sm:$0xf]
        %v991 = vld [vmem:[#allocation8 + $0x14] sm:$0xf]
        %v992 = vld [vmem:[#allocation8 + $0x18] sm:$0xf]
        %v993 = vld [vmem:[#allocation8 + $0x1c] sm:$0xf]
        %v994 = vld [vmem:[#allocation8 + $0x20] sm:$0xf]
        %v995 = vld [vmem:[#allocation8 + $0x24] sm:$0xf]
        %v996 = vld [vmem:[#allocation8 + $0x28] sm:$0xf]
        %v997 = vld [vmem:[#allocation8 + $0x2c] sm:$0xf]
        %v998 = vld [vmem:[#allocation8 + $0x30] sm:$0xf]
        %v999 = vld [vmem:[#allocation8 + $0x34] sm:$0xf]
        %v1000 = vld [vmem:[#allocation8 + $0x38] sm:$0xf]
        %v1001 = vld [vmem:[#allocation8 + $0x3c] sm:$0xf]
        %v1002 = vld [vmem:[#allocation8 + $0x40] sm:$0xf]
        %v1003 = vld [vmem:[#allocation8 + $0x44] sm:$0xf]
        %v1004 = vld [vmem:[#allocation8 + $0x48] sm:$0xf]
        %v1005 = vld [vmem:[#allocation8 + $0x4c] sm:$0xf]
        %v1006 = vld [vmem:[#allocation8 + $0x50] sm:$0xf]
        %v1007 = vld [vmem:[#allocation8 + $0x54] sm:$0xf]
        %v1008 = vld [vmem:[#allocation8 + $0x58] sm:$0xf]
        %v1009 = vld [vmem:[#allocation8 + $0x5c] sm:$0xf]
        %v1010 = vld [vmem:[#allocation8 + $0x60] sm:$0xf]
        %v1011 = vld [vmem:[#allocation8 + $0x64] sm:$0xf]
        %v1012 = vld [vmem:[#allocation8 + $0x68] sm:$0xf]
        %v1013 = vld [vmem:[#allocation8 + $0x6c] sm:$0xf]
        %v1014 = vld [vmem:[#allocation8 + $0x70] sm:$0xf]
        %v1015 = vld [vmem:[#allocation8 + $0x74] sm:$0xf]
        %v1016 = vld [vmem:[#allocation8 + $0x78] sm:$0xf]
        %v1017 = vld [vmem:[#allocation8 + $0x7c] sm:$0xf]
        %v1018 = vld [vmem:[%s6] sm:$0x1]
        %v1020 = vlaneseq
        %v1021 = vshrl.u32 %v1020, 7
        %v1022 = vsub.s32 0, %v1021
        %v1023 = vrot.slane %v1018, %v1022
        %v1057 = vunpack.c.l.b16 %v986
        %v1058 = vunpack.c.l.b16 %v987
        %v1059 = vunpack.c.l.b16 %v988
        %v1060 = vunpack.c.l.b16 %v989
        %v1061 = vunpack.c.l.b16 %v990
        %v1062 = vunpack.c.l.b16 %v991
        %v1063 = vunpack.c.l.b16 %v992
        %v1064 = vunpack.c.l.b16 %v993
        %v1065 = vunpack.c.l.b16 %v994
        %v1066 = vunpack.c.l.b16 %v995
        %v1067 = vunpack.c.l.b16 %v996
        %v1068 = vunpack.c.l.b16 %v997
        %v1069 = vunpack.c.l.b16 %v998
        %v1070 = vunpack.c.l.b16 %v999
        %v1071 = vunpack.c.l.b16 %v1000
        %v1072 = vunpack.c.l.b16 %v1001
        %v1073 = vunpack.c.l.b16 %v1002
        %v1074 = vunpack.c.l.b16 %v1003
        %v1075 = vunpack.c.l.b16 %v1004
        %v1076 = vunpack.c.l.b16 %v1005
        %v1077 = vunpack.c.l.b16 %v1006
        %v1078 = vunpack.c.l.b16 %v1007
        %v1079 = vunpack.c.l.b16 %v1008
        %v1080 = vunpack.c.l.b16 %v1009
        %v1081 = vunpack.c.l.b16 %v1010
        %v1082 = vunpack.c.l.b16 %v1011
        %v1083 = vunpack.c.l.b16 %v1012
        %v1084 = vunpack.c.l.b16 %v1013
        %v1085 = vunpack.c.l.b16 %v1014
        %v1086 = vunpack.c.l.b16 %v1015
        %v1087 = vunpack.c.l.b16 %v1016
        %v1088 = vunpack.c.l.b16 %v1017
        %v1089 = vpack.c.b16 %v1058, %v1057
        %v1090 = vpack.c.b16 %v1060, %v1059
        %v1091 = vpack.c.b16 %v1062, %v1061
        %v1092 = vpack.c.b16 %v1064, %v1063
        %v1093 = vpack.c.b16 %v1066, %v1065
        %v1094 = vpack.c.b16 %v1068, %v1067
        %v1095 = vpack.c.b16 %v1070, %v1069
        %v1096 = vpack.c.b16 %v1072, %v1071
        %v1097 = vpack.c.b16 %v1074, %v1073
        %v1098 = vpack.c.b16 %v1076, %v1075
        %v1099 = vpack.c.b16 %v1078, %v1077
        %v1100 = vpack.c.b16 %v1080, %v1079
        %v1101 = vpack.c.b16 %v1082, %v1081
        %v1102 = vpack.c.b16 %v1084, %v1083
        %v1103 = vpack.c.b16 %v1086, %v1085
        %v1104 = vpack.c.b16 %v1088, %v1087
        %1121 = vmatprep.subr.bf16.mxu0 0
        %1122 = vmatpush1.bf16.msra.mxu0 %v1096
        %1123 = vmatprep.subr.bf16.mxu0 0
        %1124 = vmatpush1.bf16.msra.mxu0 %v1095
        %1125 = vmatprep.subr.bf16.mxu0 0
        %1126 = vmatpush1.bf16.msra.mxu0 %v1094
        %1127 = vmatprep.subr.bf16.mxu0 0
        %1128 = vmatpush1.bf16.msra.mxu0 %v1093
        %1129 = vmatprep.subr.bf16.mxu0 0
        %1130 = vmatpush1.bf16.msra.mxu0 %v1092
        %1131 = vmatprep.subr.bf16.mxu0 0
        %1132 = vmatpush1.bf16.msra.mxu0 %v1091
        %1133 = vmatprep.subr.bf16.mxu0 0
        %1134 = vmatpush1.bf16.msra.mxu0 %v1090
        %1135 = vmatprep.subr.bf16.mxu0 0
        %1136 = vmatpush1.bf16.msra.mxu0 %v1089
        %1137 = vmatprep.subr.bf16.mxu0 0
        %1138 = vmatpush2.bf16.msra.mxu0 %v1104
        %1139 = vmatprep.subr.bf16.mxu0 0
        %1140 = vmatpush2.bf16.msra.mxu0 %v1103
        %1141 = vmatprep.subr.bf16.mxu0 0
        %1142 = vmatpush2.bf16.msra.mxu0 %v1102
        %1143 = vmatprep.subr.bf16.mxu0 0
        %1144 = vmatpush2.bf16.msra.mxu0 %v1101
        %1145 = vmatprep.subr.bf16.mxu0 0
        %1146 = vmatpush2.bf16.msra.mxu0 %v1100
        %1147 = vmatprep.subr.bf16.mxu0 0
        %1148 = vmatpush2.bf16.msra.mxu0 %v1099
        %1149 = vmatprep.subr.bf16.mxu0 0
        %1150 = vmatpush2.bf16.msra.mxu0 %v1098
        %1151 = vmatprep.subr.bf16.mxu0 0
        %1152 = vmatpush2.bf16.msra.mxu0 %v1097
        %1153 = vmatprep.mubr.bf16.mxu0 %v971
        %1154 = vmatmul.mubr.bf16.gmra.mxu0 %v970
        %v1155 = vpop.f32.mrf.mxu0
        %v1156 = vadd.f32 %v1023, %v1155
        %v1157 = vpop.f32.mrf.mxu0
        %v1158 = vpop.f32.mrf.mxu0
        %v1159 = vadd.f32 %v1023, %v1158
        %v1160 = vpop.f32.mrf.mxu0
        %1161 = vmatprep.mubr.bf16.mxu0 %v973
        %1162 = vmatmul.mubr.bf16.gmra.mxu0 %v972
        %v1163 = vpop.f32.mrf.mxu0
        %v1164 = vadd.f32 %v1023, %v1163
        %v1165 = vpop.f32.mrf.mxu0
        %v1166 = vpop.f32.mrf.mxu0
        %v1167 = vadd.f32 %v1023, %v1166
        %v1168 = vpop.f32.mrf.mxu0
        %1169 = vmatprep.mubr.bf16.mxu0 %v975
        %1170 = vmatmul.mubr.bf16.gmra.mxu0 %v974
        %v1171 = vpop.f32.mrf.mxu0
        %v1172 = vadd.f32 %v1023, %v1171
        %v1173 = vpop.f32.mrf.mxu0
        %v1174 = vpop.f32.mrf.mxu0
        %v1175 = vadd.f32 %v1023, %v1174
        %v1176 = vpop.f32.mrf.mxu0
        %1177 = vmatprep.mubr.bf16.mxu0 %v977
        %1178 = vmatmul.mubr.bf16.gmra.mxu0 %v976
        %v1179 = vpop.f32.mrf.mxu0
        %v1180 = vadd.f32 %v1023, %v1179
        %v1181 = vpop.f32.mrf.mxu0
        %v1182 = vpop.f32.mrf.mxu0
        %v1183 = vadd.f32 %v1023, %v1182
        %v1184 = vpop.f32.mrf.mxu0
        %1185 = vmatprep.mubr.bf16.mxu0 %v979
        %1186 = vmatmul.mubr.bf16.gmra.mxu0 %v978
        %v1187 = vpop.f32.mrf.mxu0
        %v1188 = vadd.f32 %v1023, %v1187
        %v1189 = vpop.f32.mrf.mxu0
        %v1190 = vpop.f32.mrf.mxu0
        %v1191 = vadd.f32 %v1023, %v1190
        %v1192 = vpop.f32.mrf.mxu0
        %1193 = vmatprep.mubr.bf16.mxu0 %v981
        %1194 = vmatmul.mubr.bf16.gmra.mxu0 %v980
        %v1195 = vpop.f32.mrf.mxu0
        %v1196 = vadd.f32 %v1023, %v1195
        %v1197 = vpop.f32.mrf.mxu0
        %v1198 = vpop.f32.mrf.mxu0
        %v1199 = vadd.f32 %v1023, %v1198
        %v1200 = vpop.f32.mrf.mxu0
        %1201 = vmatprep.mubr.bf16.mxu0 %v983
        %1202 = vmatmul.mubr.bf16.gmra.mxu0 %v982
        %v1203 = vpop.f32.mrf.mxu0
        %v1204 = vadd.f32 %v1023, %v1203
        %v1205 = vpop.f32.mrf.mxu0
        %v1206 = vpop.f32.mrf.mxu0
        %v1207 = vadd.f32 %v1023, %v1206
        %v1208 = vpop.f32.mrf.mxu0
        %1209 = vmatprep.mubr.bf16.mxu0 %v985
        %1210 = vmatmul.mubr.bf16.gmra.mxu0 %v984
        %v1211 = vpop.f32.mrf.mxu0
        %v1212 = vadd.f32 %v1023, %v1211
        %v1213 = vpop.f32.mrf.mxu0
        %v1214 = vpop.f32.mrf.mxu0
        %v1215 = vadd.f32 %v1023, %v1214
        %v1216 = vpop.f32.mrf.mxu0
        %1217 = vdwg.mxu0
        %1218 = vst [vmem:[%s338] sm:$0xff] %v1156
        %1219 = vst [vmem:[%s338 + $0x8] sm:$0xff] %v1159
        %1220 = vst [vmem:[%s338 + $0x10] sm:$0xff] %v1164
        %1221 = vst [vmem:[%s338 + $0x18] sm:$0xff] %v1167
        %1222 = vst [vmem:[%s338 + $0x20] sm:$0xff] %v1172
        %1223 = vst [vmem:[%s338 + $0x28] sm:$0xff] %v1175
        %1224 = vst [vmem:[%s338 + $0x30] sm:$0xff] %v1180
        %1225 = vst [vmem:[%s338 + $0x38] sm:$0xff] %v1183
        %1226 = vst [vmem:[%s338 + $0x40] sm:$0xff] %v1188
        %1227 = vst [vmem:[%s338 + $0x48] sm:$0xff] %v1191
        %1228 = vst [vmem:[%s338 + $0x50] sm:$0xff] %v1196
        %1229 = vst [vmem:[%s338 + $0x58] sm:$0xff] %v1199
        %1230 = vst [vmem:[%s338 + $0x60] sm:$0xff] %v1204
        %1231 = vst [vmem:[%s338 + $0x68] sm:$0xff] %v1207
        %1232 = vst [vmem:[%s338 + $0x70] sm:$0xff] %v1212
        %1233 = vst [vmem:[%s338 + $0x78] sm:$0xff] %v1215
        %s1234 = sand.u32 %s186, 1
        %s1235 = scalar_lea.sflag [#allocation4], %s1234
        %s1236 = sand.u32 %s186, 1
        %s1237 = smul.addr %s1236, 128
        %s1238 = scalar_lea.vmem [#allocation10], %s1237
        // Predicated region
        $region65: #{tpu_custom_call.1} parent=47 // pred_check
          %p1239 = pneg %p196
        $region66: #{tpu_custom_call.1} parent=47 // pred_check_branch
          %1241 = sbr.rel (%p1239) target = $region68
        $region67: #{tpu_custom_call.1} parent=47 // pred_region
          %s1242 = smul.u32 16, %s26
          %s1244 = ssub.s32 2048, 2048
          %1245 = vsyncadd %s1235, %s1244
          %s1246 = smul.addr %s1242, 128
          %s1247 = scalar_lea.hbm %s7, %s1246
          %s1248 = sshll.u32 %s1238, 4
          %s1249 = int_to_ptr.vmem [resolvable:$true] %s1248
          %1254 = dma.vmem_to_hbm [thread:$0]  %s1249, 2048, %s1247, %s1235, 128, 128, 8
        $region68: #{tpu_custom_call.1} parent=47 // pred_fallthru
          _
      $region48: #{tpu_custom_call.1} parent=5 // pred_fallthru
        _
      %p1255 = scmp.le.s32.totalorder 2, %s21
      // Predicated region
      $region69: #{tpu_custom_call.1} parent=5 // pred_check
        %p1256 = pneg %p1255
      $region70: #{tpu_custom_call.1} parent=5 // pred_check_branch
        %1258 = sbr.rel (%p1256) target = $region72
      $region71: #{tpu_custom_call.1} parent=5 // pred_region
        %s1259 = ssub.s32 %s21, 2
        // Predicated region
        $region73: #{tpu_custom_call.1} parent=71 // pred_check
          %p1260 = pneg %p202
        $region74: #{tpu_custom_call.1} parent=71 // pred_check_branch
          %1262 = sbr.rel (%p1260) target = $region76
        $region75: #{tpu_custom_call.1} parent=71 // pred_region
          %s1263 = sand.u32 %s187, 1
          %s1264 = scalar_lea.sflag [#allocation4], %s1263
          %s1265 = sand.u32 %s187, 1
          %s1266 = smul.addr %s1265, 128
          %s1267 = scalar_lea.vmem [#allocation10], %s1266
          %1268 = dma.done %s1264, 2048
        $region76: #{tpu_custom_call.1} parent=71 // pred_fallthru
          _
      $region72: #{tpu_custom_call.1} parent=5 // pred_fallthru
        _
    $region6: #{tpu_custom_call.1} parent=1 // loop_footer
      %s25 = sadd.s32 1, %s21
    $region7: #{tpu_custom_call.1} parent=1 // loop_footer_branch
      %20 = sbr.rel target = $region3
    $region8: #{tpu_custom_call.1} parent=1 // loop_exit
      _
    %1269 = vsyncpa [#allocation3], 1
    %s1270 = scalar_lea.sflag [#allocation3], 1
    %1271 = vsyncpa %s1270, 1
    %1272 = vsyncpa [#allocation6], 1
    %1273 = vsyncpa [#allocation9], 1
    %1274 = vsyncpa [#allocation4], 1
    %s1275 = scalar_lea.sflag [#allocation4], 1
    %1276 = vsyncpa %s1275, 1

</llo_original>
